<compile_context>
chip_gen: v5e
topology: v5e:2x2
jax: 0.10.0
libtpu: 0.0.40
codegen_flags: <defaults>
</compile_context>

<pallas_src>
import functools

import numpy as np
import jax
import jax.numpy as jnp
from jax import lax
from jax.experimental import pallas as pl
from jax.experimental.pallas import tpu as pltpu


_VMEM = pl.BlockSpec(memory_space=pltpu.MemorySpace.VMEM)   # whole array in VMEM
_ANY = pl.BlockSpec(memory_space=pl.ANY)                    # stay in HBM, manual DMA


def _round_up(x, m):
    return ((x + m - 1) // m) * m


# ----------------------------------------------------------------------------
# Kernel 0: hoisted embedding projection  x_proj = emb @ W_ih[:E] + (b_ih+b_hh)
# computed as one big-M tiled matmul instead of per-timestep inside the loop.
# ----------------------------------------------------------------------------
def xproj_kernel(emb_ref, w_ref, b_ref, out_ref):
    out_ref[...] = (jnp.dot(emb_ref[...], w_ref[...],
                            preferred_element_type=jnp.float32)
                    + b_ref[...])


# ----------------------------------------------------------------------------
# Kernel 1: full LSTM recurrence in a single gridless kernel invocation.
# x_proj and h_seq live in HBM and are streamed with double-buffered DMA.
# ----------------------------------------------------------------------------
def lstm_recurrence_kernel(mean_ref, w_init_h_ref, b_init_h_ref,
                           w_init_c_ref, b_init_c_ref,
                           w_fb_ref, b_fb_ref, w_rec_ref,
                           x_hbm, h_hbm,
                           x_buf, h_buf, cat_buf, x_sem, h_sem):
    f32 = jnp.float32
    bf16 = jnp.bfloat16
    T = h_hbm.shape[0]                 # static decode length
    Bp = mean_ref.shape[0]
    Enc = w_fb_ref.shape[1]
    D = w_init_h_ref.shape[1]

    def start_x(t, slot):
        pltpu.make_async_copy(x_hbm.at[t], x_buf.at[slot], x_sem.at[slot]).start()

    def wait_x(slot):
        pltpu.make_async_copy(x_hbm.at[0], x_buf.at[slot], x_sem.at[slot]).wait()

    def start_h(t, slot):
        pltpu.make_async_copy(h_buf.at[slot], h_hbm.at[t], h_sem.at[slot]).start()

    def wait_h(slot):
        pltpu.make_async_copy(h_buf.at[slot], h_hbm.at[0], h_sem.at[slot]).wait()

    # Prime the x_proj stream for t = 0 before doing the init-state matmuls.
    start_x(0, 0)

    # init_hidden_state: h = init_h(mean_enc), c = init_c(mean_enc)
    m = mean_ref[...]                                                  # bf16
    h0 = (jnp.dot(m, w_init_h_ref[...], preferred_element_type=f32)
          + b_init_h_ref[...])
    c0 = (jnp.dot(m, w_init_c_ref[...], preferred_element_type=f32)
          + b_init_c_ref[...])

    # Loop-invariant weight loads / bias broadcast hoisted out of the loop.
    w_fb = w_fb_ref[...]
    w_rec = w_rec_ref[...]
    b_fb = jnp.broadcast_to(b_fb_ref[...], (Bp, Enc))

    def step(t, carry):
        h, c = carry                                                   # f32
        slot = t % 2

        # Prefetch next timestep's x-projection while computing this one.
        @pl.when(t + 1 < T)
        def _():
            start_x(t + 1, 1 - slot)

        h_bf = h.astype(bf16)
        # gate = sigmoid(f_beta(h))
        gate = jax.nn.sigmoid(
            jnp.dot(h_bf, w_fb, preferred_element_type=f32) + b_fb)

        # Merged recurrence matmul: [gate, h] @ [W_ih[E:]; W_hh]
        cat_buf[:, :Enc] = gate.astype(bf16)
        cat_buf[:, Enc:] = h_bf
        wait_x(slot)
        gates = x_buf[slot] + jnp.dot(cat_buf[...], w_rec,
                                      preferred_element_type=f32)

        i_g = jax.nn.sigmoid(gates[:, 0 * D:1 * D])
        f_g = jax.nn.sigmoid(gates[:, 1 * D:2 * D])
        g_g = jnp.tanh(gates[:, 2 * D:3 * D])
        o_g = jax.nn.sigmoid(gates[:, 3 * D:4 * D])
        c_new = f_g * c + i_g * g_g
        h_new = o_g * jnp.tanh(c_new)

        # Fire-and-forget bf16 writeback of h_t (double-buffered; only wait
        # for the copy that used this slot two steps ago).
        @pl.when(t >= 2)
        def _():
            wait_h(slot)
        h_buf[slot] = h_new.astype(bf16)
        start_h(t, slot)
        return (h_new, c_new)

    lax.fori_loop(0, T, step, (h0, c0))

    # Drain the outstanding h writebacks.
    if T >= 2:
        wait_h((T - 2) % 2)
    wait_h((T - 1) % 2)


# ----------------------------------------------------------------------------
# Kernel 2: hoisted vocab projection — one batched (T*B, D) @ (D, V) matmul,
# decode-length mask folded in via a (T*B, 1) validity column.
# ----------------------------------------------------------------------------
def fc_kernel(h_ref, w_ref, b_ref, valid_ref, out_ref):
    acc = jnp.dot(h_ref[...], w_ref[...], preferred_element_type=jnp.float32)
    # TODO(synk): nn.Dropout(p=0.5) before fc is identity in eval mode;
    # training-mode stochastic dropout is not modeled here.
    out_ref[...] = (acc + b_ref[...]) * valid_ref[...]


@functools.partial(jax.jit, static_argnums=(4,))
def _decoder_forward_impl(params, encoder_out, encoded_captions,
                          caption_lengths, T_dec):
    B = encoder_out.shape[0]
    Enc = encoder_out.shape[-1]
    E = params["embedding"].shape[1]
    D = params["w_hh"].shape[0]
    V = params["w_fc"].shape[1]
    f32, bf16 = jnp.float32, jnp.bfloat16

    # ---- glue (fused by XLA under jit): sort, gather, mean pool, casts ----
    lens = jnp.squeeze(caption_lengths, axis=1)
    sort_ind = jnp.argsort(-lens)                       # descending (stable)
    lens_sorted = lens[sort_ind]
    enc = encoder_out.reshape(B, -1, Enc)[sort_ind]     # (B, num_pixels, Enc)
    caps = encoded_captions[sort_ind]                   # (B, T_cap)
    decode_lengths = lens_sorted - 1

    # Batch padded to a sublane-aligned multiple of 8; padded rows get
    # decode_length 0 so they are masked to zero and sliced off at the end.
    B_pad = max(8, _round_up(B, 8))
    pad_b = B_pad - B

    embeddings = params["embedding"].astype(bf16)[caps]          # (B, T_cap, E)
    emb_tm = jnp.transpose(embeddings, (1, 0, 2))[:T_dec]        # (T_dec, B, E)
    mean_enc = jnp.mean(enc, axis=1).astype(bf16)                # (B, Enc)
    dl = decode_lengths.astype(jnp.int32)
    if pad_b:
        emb_tm = jnp.pad(emb_tm, ((0, 0), (0, pad_b), (0, 0)))
        mean_enc = jnp.pad(mean_enc, ((0, pad_b), (0, 0)))
        dl = jnp.pad(dl, (0, pad_b))

    # Split W_ih into the embedding part (hoisted projection) and the gate
    # part; merge the gate part with W_hh into one recurrence matrix; pre-sum
    # the LSTM bias pair.  MXU operands in bf16, f32 accumulation.
    w_ih_e = params["w_ih"][:E].astype(bf16)                     # (E, 4D)
    w_rec = jnp.concatenate([params["w_ih"][E:], params["w_hh"]],
                            axis=0).astype(bf16)                 # (Enc+D, 4D)
    b_gates = params["b_ih"] + params["b_hh"]                    # (1, 4D) f32

    M = T_dec * B_pad

    # ---- Pallas kernel 0: hoisted embedding -> gate projection ----
    emb_flat = emb_tm.reshape(M, E)
    TMx = min(512, M)                                  # M is a multiple of 8
    x_proj_flat = pl.pallas_call(
        xproj_kernel,
        out_shape=jax.ShapeDtypeStruct((M, 4 * D), f32),
        grid=(pl.cdiv(M, TMx),),
        in_specs=[
            pl.BlockSpec((TMx, E), lambda i: (i, 0)),
            pl.BlockSpec((E, 4 * D), lambda i: (0, 0)),
            pl.BlockSpec((1, 4 * D), lambda i: (0, 0)),
        ],
        out_specs=pl.BlockSpec((TMx, 4 * D), lambda i: (i, 0)),
        compiler_params=pltpu.CompilerParams(
            dimension_semantics=("parallel",)),
    )(emb_flat, w_ih_e, b_gates)
    x_proj = x_proj_flat.reshape(T_dec, B_pad, 4 * D)

    # ---- Pallas kernel 1: recurrence (gridless; x_proj / h_seq streamed) ----
    h_seq = pl.pallas_call(
        lstm_recurrence_kernel,
        out_shape=jax.ShapeDtypeStruct((T_dec, B_pad, D), bf16),
        in_specs=[_VMEM] * 8 + [_ANY],
        out_specs=_ANY,
        scratch_shapes=[
            pltpu.VMEM((2, B_pad, 4 * D), f32),     # x_proj double buffer
            pltpu.VMEM((2, B_pad, D), bf16),        # h writeback double buffer
            pltpu.VMEM((B_pad, Enc + D), bf16),     # [gate, h] concat scratch
            pltpu.SemaphoreType.DMA((2,)),          # x stream sems
            pltpu.SemaphoreType.DMA((2,)),          # h writeback sems
        ],
    )(mean_enc,
      params["w_init_h"].astype(bf16), params["b_init_h"],
      params["w_init_c"].astype(bf16), params["b_init_c"],
      params["w_fb"].astype(bf16), params["b_fb"],
      w_rec, x_proj)

    # ---- Pallas kernel 2: batched vocab projection + decode-length mask ----
    TV = min(1024, _round_up(V, 128))                  # lane-dense vocab tile
    V_pad = _round_up(V, TV)
    TM = min(512, M)

    w_fc = params["w_fc"].astype(bf16)
    b_fc = params["b_fc"]
    if V_pad > V:
        w_fc = jnp.pad(w_fc, ((0, 0), (0, V_pad - V)))
        b_fc = jnp.pad(b_fc, ((0, 0), (0, V_pad - V)))

    h_flat = h_seq.reshape(M, D)                                  # bf16, free
    valid = (jnp.arange(T_dec, dtype=jnp.int32)[:, None] < dl[None, :])
    valid = valid.astype(f32).reshape(M, 1)                       # (T*B_pad, 1)

    # Grid order: vocab tiles OUTER, M tiles INNER -> W_fc / b_fc blocks stay
    # VMEM-resident across the inner loop; only the small bf16 h tile streams.
    preds_flat = pl.pallas_call(
        fc_kernel,
        out_shape=jax.ShapeDtypeStruct((M, V_pad), f32),
        grid=(V_pad // TV, pl.cdiv(M, TM)),
        in_specs=[
            pl.BlockSpec((TM, D), lambda vi, mi: (mi, 0)),   # h rows (bf16)
            pl.BlockSpec((D, TV), lambda vi, mi: (0, vi)),   # fc weight tile
            pl.BlockSpec((1, TV), lambda vi, mi: (0, vi)),   # fc bias tile
            pl.BlockSpec((TM, 1), lambda vi, mi: (mi, 0)),   # validity column
        ],
        out_specs=pl.BlockSpec((TM, TV), lambda vi, mi: (mi, vi)),
        compiler_params=pltpu.CompilerParams(
            dimension_semantics=("parallel", "parallel")),
    )(h_flat, w_fc, b_fc, valid)

    preds_tm = preds_flat.reshape(T_dec, B_pad, V_pad)
    predictions = jnp.transpose(preds_tm, (1, 0, 2))[:B, :, :V]   # (B, T, V)
    return predictions, caps, decode_lengths, sort_ind


def decoder_forward(params, encoder_out, encoded_captions, caption_lengths):
    """Mirrors Decoder.forward. Returns (predictions, sorted_captions,
    decode_lengths, None, sort_ind)."""
    # Static decode length read from the *input* lengths before anything is
    # dispatched (no mid-pipeline device->host sync).  One recompile per
    # distinct T_dec value.
    T_dec = int(np.max(np.asarray(caption_lengths))) - 1
    predictions, caps, decode_lengths, sort_ind = _decoder_forward_impl(
        params, encoder_out, encoded_captions, caption_lengths, T_dec)
    return predictions, caps, decode_lengths, None, sort_ind


def init_params(key, embed_dim, decoder_dim, vocab_size, encoder_dim):
    """Deterministic synthetic init mimicking the PyTorch module's init."""
    ks = jax.random.split(key, 12)
    u = lambda k, shape, b: jax.random.uniform(k, shape, jnp.float32, -b, b)
    inp = embed_dim + encoder_dim
    k_enc = 1.0 / np.sqrt(encoder_dim)
    k_dec = 1.0 / np.sqrt(decoder_dim)
    return {
        "embedding": u(ks[0], (vocab_size, embed_dim), 0.1),
        "w_init_h": u(ks[1], (encoder_dim, decoder_dim), k_enc),
        "b_init_h": u(ks[2], (1, decoder_dim), k_enc),
        "w_init_c": u(ks[3], (encoder_dim, decoder_dim), k_enc),
        "b_init_c": u(ks[4], (1, decoder_dim), k_enc),
        "w_fb": u(ks[5], (decoder_dim, encoder_dim), k_dec),
        "b_fb": u(ks[6], (1, encoder_dim), k_dec),
        "w_ih": u(ks[7], (inp, 4 * decoder_dim), k_dec),
        "b_ih": u(ks[8], (1, 4 * decoder_dim), k_dec),
        "w_hh": u(ks[9], (decoder_dim, 4 * decoder_dim), k_dec),
        "b_hh": u(ks[10], (1, 4 * decoder_dim), k_dec),
        "w_fc": u(ks[11], (decoder_dim, vocab_size), 0.1),
        "b_fc": jnp.zeros((1, vocab_size), jnp.float32),
    }


if __name__ == "__main__":
    embed_dim, decoder_dim, vocab_size, encoder_dim = 128, 128, 256, 128
    B, T_cap, enc_image_size = 8, 8, 4

    key = jax.random.PRNGKey(0)
    kp, k1, k2, k3 = jax.random.split(key, 4)
    params = init_params(kp, embed_dim, decoder_dim, vocab_size, encoder_dim)

    encoder_out = jax.random.normal(
        k1, (B, enc_image_size, enc_image_size, encoder_dim), jnp.float32)
    encoded_captions = jax.random.randint(k2, (B, T_cap), 0, vocab_size)
    caption_lengths = jax.random.randint(k3, (B, 1), 3, T_cap + 1)

    preds, caps_sorted, decode_lengths, _, sort_ind = decoder_forward(
        params, encoder_out, encoded_captions, caption_lengths)
    jax.block_until_ready(preds)

    T_dec = int(np.max(np.asarray(caption_lengths))) - 1
    assert preds.shape == (B, T_dec, vocab_size)
    assert bool(jnp.all(jnp.isfinite(preds)))
    print("KERNEL_OK")
</pallas_src>

<mosaic_0001>
module attributes {stable_mosaic.version = 11 : i64} {
  func.func @xproj_kernel(%arg0: i32, %arg1: memref<40x128xbf16, #tpu.memory_space<vmem>>, %arg2: memref<128x512xbf16, #tpu.memory_space<vmem>>, %arg3: memref<1x512xf32, #tpu.memory_space<vmem>>, %arg4: memref<40x512xf32, #tpu.memory_space<vmem>>) attributes {dimension_semantics = [#tpu.dimension_semantics<parallel>], iteration_bounds = array<i64: 1>, scalar_prefetch = 0 : i64, scratch_operands = 0 : i64, tpu.core_type = #tpu.core_type<tc>, window_params = [{transform_indices = @transform_0, window_bounds = array<i64: 40, 128>}, {pipeline_mode = #tpu.pipeline_mode<synchronous>, transform_indices = @transform_1, window_bounds = array<i64: 128, 512>}, {pipeline_mode = #tpu.pipeline_mode<synchronous>, transform_indices = @transform_2, window_bounds = array<i64: 1, 512>}, {transform_indices = @transform_3, window_bounds = array<i64: 40, 512>}]} {
    %c0 = arith.constant 0 : index
    %c0_0 = arith.constant 0 : index
    %0 = vector.load %arg1[%c0, %c0_0] : memref<40x128xbf16, #tpu.memory_space<vmem>>, vector<40x128xbf16>
    %c0_1 = arith.constant 0 : index
    %c0_2 = arith.constant 0 : index
    %1 = vector.load %arg2[%c0_1, %c0_2] : memref<128x512xbf16, #tpu.memory_space<vmem>>, vector<128x512xbf16>
    %cst = arith.constant dense<0.000000e+00> : vector<40x512xf32>
    %2 = tpu.matmul %0, %1, %cst {dimension_numbers = #tpu.dot_dimension_numbers<[1], [0], [0], [1], [0, 0, 1, 1], [], []>} : vector<40x128xbf16>, vector<128x512xbf16>, vector<40x512xf32> -> vector<40x512xf32>
    %c0_3 = arith.constant 0 : index
    %c0_4 = arith.constant 0 : index
    %3 = vector.load %arg3[%c0_3, %c0_4] : memref<1x512xf32, #tpu.memory_space<vmem>>, vector<1x512xf32>
    %4 = vector.broadcast %3 : vector<1x512xf32> to vector<40x512xf32>
    %5 = arith.addf %2, %4 : vector<40x512xf32>
    %c0_5 = arith.constant 0 : index
    %c0_6 = arith.constant 0 : index
    %6 = vector.load %arg4[%c0_5, %c0_6] : memref<40x512xf32, #tpu.memory_space<vmem>>, vector<40x512xf32>
    tpu.vector_store %arg4[%c0_5, %c0_6], %5 {strides = array<i32>} : memref<40x512xf32, #tpu.memory_space<vmem>>, vector<40x512xf32>,
    return
  }
  func.func @transform_0(%arg0: i32) -> (i32, i32) {
    %c0_i32 = arith.constant 0 : i32
    %c0_i32_0 = arith.constant 0 : i32
    return %arg0, %c0_i32 : i32, i32
  }
  func.func @transform_1(%arg0: i32) -> (i32, i32) {
    %c0_i32 = arith.constant 0 : i32
    %c0_i32_0 = arith.constant 0 : i32
    %c0_i32_1 = arith.constant 0 : i32
    return %c0_i32, %c0_i32_0 : i32, i32
  }
  func.func @transform_2(%arg0: i32) -> (i32, i32) {
    %c0_i32 = arith.constant 0 : i32
    %c0_i32_0 = arith.constant 0 : i32
    %c0_i32_1 = arith.constant 0 : i32
    return %c0_i32, %c0_i32_0 : i32, i32
  }
  func.func @transform_3(%arg0: i32) -> (i32, i32) {
    %c0_i32 = arith.constant 0 : i32
    %c0_i32_0 = arith.constant 0 : i32
    return %arg0, %c0_i32 : i32, i32
  }
}

module attributes {stable_mosaic.version = 11 : i64} {
  func.func @lstm_recurrence_kernel(%arg0: memref<8x128xbf16, #tpu.memory_space<vmem>>, %arg1: memref<128x128xbf16, #tpu.memory_space<vmem>>, %arg2: memref<1x128xf32, #tpu.memory_space<vmem>>, %arg3: memref<128x128xbf16, #tpu.memory_space<vmem>>, %arg4: memref<1x128xf32, #tpu.memory_space<vmem>>, %arg5: memref<128x128xbf16, #tpu.memory_space<vmem>>, %arg6: memref<1x128xf32, #tpu.memory_space<vmem>>, %arg7: memref<256x512xbf16, #tpu.memory_space<vmem>>, %arg8: memref<5x8x512xf32, #tpu.memory_space<any>>, %arg9: memref<5x8x128xbf16, #tpu.memory_space<any>>, %arg10: memref<2x8x512xf32, #tpu.memory_space<vmem>>, %arg11: memref<2x8x128xbf16, #tpu.memory_space<vmem>>, %arg12: memref<8x256xbf16, #tpu.memory_space<vmem>>, %arg13: memref<2x!tpu.dma_semaphore, #tpu.memory_space<semaphore_mem>>, %arg14: memref<2x!tpu.dma_semaphore, #tpu.memory_space<semaphore_mem>>) attributes {dimension_semantics = [], scalar_prefetch = 0 : i64, scratch_operands = 5 : i64, tpu.core_type = #tpu.core_type<tc>} {
    %c0_i32 = arith.constant 0 : i32
    %c0_i32_0 = arith.constant 0 : i32
    %c0_i32_1 = arith.constant 0 : i32
    %c0_i32_2 = arith.constant 0 : i32
    %c0_i32_3 = arith.constant 0 : i32
    %0 = tpu.memref_slice %arg8[%c0_i32, %c0_i32_2, %c0_i32_3] : memref<5x8x512xf32, #tpu.memory_space<any>> -> memref<1x8x512xf32, #tpu.memory_space<any>>
    %1 = tpu.memref_squeeze %0 : memref<1x8x512xf32, #tpu.memory_space<any>> -> memref<8x512xf32, #tpu.memory_space<any>>
    %c0_i32_4 = arith.constant 0 : i32
    %c0_i32_5 = arith.constant 0 : i32
    %2 = tpu.memref_slice %arg10[%c0_i32_0, %c0_i32_4, %c0_i32_5] : memref<2x8x512xf32, #tpu.memory_space<vmem>> -> memref<1x8x512xf32, #tpu.memory_space<vmem>>
    %3 = tpu.memref_squeeze %2 : memref<1x8x512xf32, #tpu.memory_space<vmem>> -> memref<8x512xf32, #tpu.memory_space<vmem>>
    %4 = tpu.memref_slice %arg13[%c0_i32_1] : memref<2x!tpu.dma_semaphore, #tpu.memory_space<semaphore_mem>> -> memref<1x!tpu.dma_semaphore, #tpu.memory_space<semaphore_mem>>
    %5 = tpu.memref_squeeze %4 : memref<1x!tpu.dma_semaphore, #tpu.memory_space<semaphore_mem>> -> memref<!tpu.dma_semaphore, #tpu.memory_space<semaphore_mem>>
    tpu.enqueue_dma source(%1 : memref<8x512xf32, #tpu.memory_space<any>>) target(%3 : memref<8x512xf32, #tpu.memory_space<vmem>>) target_semaphore(%5 : memref<!tpu.dma_semaphore, #tpu.memory_space<semaphore_mem>>)
    %c0 = arith.constant 0 : index
    %c0_6 = arith.constant 0 : index
    %6 = vector.load %arg0[%c0, %c0_6] : memref<8x128xbf16, #tpu.memory_space<vmem>>, vector<8x128xbf16>
    %c0_7 = arith.constant 0 : index
    %c0_8 = arith.constant 0 : index
    %7 = vector.load %arg1[%c0_7, %c0_8] : memref<128x128xbf16, #tpu.memory_space<vmem>>, vector<128x128xbf16>
    %cst = arith.constant dense<0.000000e+00> : vector<8x128xf32>
    %8 = tpu.matmul %6, %7, %cst {dimension_numbers = #tpu.dot_dimension_numbers<[1], [0], [0], [1], [0, 0, 1, 1], [], []>} : vector<8x128xbf16>, vector<128x128xbf16>, vector<8x128xf32> -> vector<8x128xf32>
    %c0_9 = arith.constant 0 : index
    %c0_10 = arith.constant 0 : index
    %9 = vector.load %arg2[%c0_9, %c0_10] : memref<1x128xf32, #tpu.memory_space<vmem>>, vector<1x128xf32>
    %10 = vector.broadcast %9 : vector<1x128xf32> to vector<8x128xf32>
    %11 = arith.addf %8, %10 : vector<8x128xf32>
    %c0_11 = arith.constant 0 : index
    %c0_12 = arith.constant 0 : index
    %12 = vector.load %arg3[%c0_11, %c0_12] : memref<128x128xbf16, #tpu.memory_space<vmem>>, vector<128x128xbf16>
    %cst_13 = arith.constant dense<0.000000e+00> : vector<8x128xf32>
    %13 = tpu.matmul %6, %12, %cst_13 {dimension_numbers = #tpu.dot_dimension_numbers<[1], [0], [0], [1], [0, 0, 1, 1], [], []>} : vector<8x128xbf16>, vector<128x128xbf16>, vector<8x128xf32> -> vector<8x128xf32>
    %c0_14 = arith.constant 0 : index
    %c0_15 = arith.constant 0 : index
    %14 = vector.load %arg4[%c0_14, %c0_15] : memref<1x128xf32, #tpu.memory_space<vmem>>, vector<1x128xf32>
    %15 = vector.broadcast %14 : vector<1x128xf32> to vector<8x128xf32>
    %16 = arith.addf %13, %15 : vector<8x128xf32>
    %c0_16 = arith.constant 0 : index
    %c0_17 = arith.constant 0 : index
    %17 = vector.load %arg5[%c0_16, %c0_17] : memref<128x128xbf16, #tpu.memory_space<vmem>>, vector<128x128xbf16>
    %c0_18 = arith.constant 0 : index
    %c0_19 = arith.constant 0 : index
    %18 = vector.load %arg7[%c0_18, %c0_19] : memref<256x512xbf16, #tpu.memory_space<vmem>>, vector<256x512xbf16>
    %c0_20 = arith.constant 0 : index
    %c0_21 = arith.constant 0 : index
    %19 = vector.load %arg6[%c0_20, %c0_21] : memref<1x128xf32, #tpu.memory_space<vmem>>, vector<1x128xf32>
    %20 = vector.shape_cast %19 : vector<1x128xf32> to vector<1x128xf32>
    %21 = vector.broadcast %20 : vector<1x128xf32> to vector<8x128xf32>
    %c0_i32_22 = arith.constant 0 : i32
    %c5_i32 = arith.constant 5 : i32
    %22 = arith.addi %c0_i32_22, %c5_i32 : i32
    %c1_i32 = arith.constant 1 : i32
    %23:2 = scf.for %arg15 = %c0_i32_22 to %22 step %c1_i32 iter_args(%arg16 = %11, %arg17 = %16) -> (vector<8x128xf32>, vector<8x128xf32>)  : i32 {
      %c2_i32 = arith.constant 2 : i32
      %c0_i32_38 = arith.constant 0 : i32
      %36 = arith.cmpi eq, %c2_i32, %c0_i32_38 : i32
      %c1_i32_39 = arith.constant 1 : i32
      %37 = arith.select %36, %c1_i32_39, %c2_i32 : i32
      %38 = arith.remsi %arg15, %37 : i32
      %c0_i32_40 = arith.constant 0 : i32
      %39 = arith.cmpi ne, %38, %c0_i32_40 : i32
      %c0_i32_41 = arith.constant 0 : i32
      %40 = arith.cmpi slt, %38, %c0_i32_41 : i32
      %c0_i32_42 = arith.constant 0 : i32
      %41 = arith.cmpi slt, %37, %c0_i32_42 : i32
      %42 = arith.xori %40, %41 : i1
      %43 = arith.andi %42, %39 : i1
      %44 = arith.addi %38, %37 : i32
      %45 = arith.select %43, %44, %38 : i32
      %c1_i32_43 = arith.constant 1 : i32
      %46 = arith.addi %arg15, %c1_i32_43 : i32
      %c5_i32_44 = arith.constant 5 : i32
      %47 = arith.cmpi slt, %46, %c5_i32_44 : i32
      %48 = arith.extui %47 : i1 to i32
      %c0_i32_45 = arith.constant 0 : i32
      %49 = arith.cmpi ne, %48, %c0_i32_45 : i32
      scf.if %49 {
        %c1_i32_72 = arith.constant 1 : i32
        %112 = arith.addi %arg15, %c1_i32_72 : i32
        %c1_i32_73 = arith.constant 1 : i32
        %113 = arith.subi %c1_i32_73, %45 : i32
        %c0_i32_74 = arith.constant 0 : i32
        %c0_i32_75 = arith.constant 0 : i32
        %114 = tpu.memref_slice %arg8[%112, %c0_i32_74, %c0_i32_75] : memref<5x8x512xf32, #tpu.memory_space<any>> -> memref<1x8x512xf32, #tpu.memory_space<any>>
        %115 = tpu.memref_squeeze %114 : memref<1x8x512xf32, #tpu.memory_space<any>> -> memref<8x512xf32, #tpu.memory_space<any>>
        %c0_i32_76 = arith.constant 0 : i32
        %c0_i32_77 = arith.constant 0 : i32
        %116 = tpu.memref_slice %arg10[%113, %c0_i32_76, %c0_i32_77] : memref<2x8x512xf32, #tpu.memory_space<vmem>> -> memref<1x8x512xf32, #tpu.memory_space<vmem>>
        %117 = tpu.memref_squeeze %116 : memref<1x8x512xf32, #tpu.memory_space<vmem>> -> memref<8x512xf32, #tpu.memory_space<vmem>>
        %118 = tpu.memref_slice %arg13[%113] : memref<2x!tpu.dma_semaphore, #tpu.memory_space<semaphore_mem>> -> memref<1x!tpu.dma_semaphore, #tpu.memory_space<semaphore_mem>>
        %119 = tpu.memref_squeeze %118 : memref<1x!tpu.dma_semaphore, #tpu.memory_space<semaphore_mem>> -> memref<!tpu.dma_semaphore, #tpu.memory_space<semaphore_mem>>
        tpu.enqueue_dma source(%115 : memref<8x512xf32, #tpu.memory_space<any>>) target(%117 : memref<8x512xf32, #tpu.memory_space<vmem>>) target_semaphore(%119 : memref<!tpu.dma_semaphore, #tpu.memory_space<semaphore_mem>>)
      } else {
      }
      %50 = arith.truncf %arg16 : vector<8x128xf32> to vector<8x128xbf16>
      %cst_46 = arith.constant dense<0.000000e+00> : vector<8x128xf32>
      %51 = tpu.matmul %50, %17, %cst_46 {dimension_numbers = #tpu.dot_dimension_numbers<[1], [0], [0], [1], [0, 0, 1, 1], [], []>} : vector<8x128xbf16>, vector<128x128xbf16>, vector<8x128xf32> -> vector<8x128xf32>
      %52 = arith.addf %51, %21 : vector<8x128xf32>
      %53 = arith.negf %52 : vector<8x128xf32>
      %54 = math.exp %53 : vector<8x128xf32>
      %cst_47 = arith.constant 1.000000e+00 : f32
      %55 = vector.broadcast %cst_47 : f32 to vector<8x128xf32>
      %56 = arith.addf %55, %54 : vector<8x128xf32>
      %57 = arith.divf %55, %56 : vector<8x128xf32>
      %58 = arith.truncf %57 : vector<8x128xf32> to vector<8x128xbf16>
      %c0_48 = arith.constant 0 : index
      %c0_49 = arith.constant 0 : index
      %59 = vector.load %arg12[%c0_48, %c0_49] : memref<8x256xbf16, #tpu.memory_space<vmem>>, vector<8x128xbf16>
      tpu.vector_store %arg12[%c0_48, %c0_49], %58 {strides = array<i32>} : memref<8x256xbf16, #tpu.memory_space<vmem>>, vector<8x128xbf16>,
      %c0_50 = arith.constant 0 : index
      %c128 = arith.constant 128 : index
      %60 = vector.load %arg12[%c0_50, %c128] : memref<8x256xbf16, #tpu.memory_space<vmem>>, vector<8x128xbf16>
      tpu.vector_store %arg12[%c0_50, %c128], %50 {strides = array<i32>} : memref<8x256xbf16, #tpu.memory_space<vmem>>, vector<8x128xbf16>,
      %c0_i32_51 = arith.constant 0 : i32
      %c0_i32_52 = arith.constant 0 : i32
      %c0_i32_53 = arith.constant 0 : i32
      %61 = tpu.memref_slice %arg8[%c0_i32_51, %c0_i32_52, %c0_i32_53] : memref<5x8x512xf32, #tpu.memory_space<any>> -> memref<1x8x512xf32, #tpu.memory_space<any>>
      %62 = tpu.memref_squeeze %61 : memref<1x8x512xf32, #tpu.memory_space<any>> -> memref<8x512xf32, #tpu.memory_space<any>>
      %c0_i32_54 = arith.constant 0 : i32
      %c0_i32_55 = arith.constant 0 : i32
      %63 = tpu.memref_slice %arg10[%45, %c0_i32_54, %c0_i32_55] : memref<2x8x512xf32, #tpu.memory_space<vmem>> -> memref<1x8x512xf32, #tpu.memory_space<vmem>>
      %64 = tpu.memref_squeeze %63 : memref<1x8x512xf32, #tpu.memory_space<vmem>> -> memref<8x512xf32, #tpu.memory_space<vmem>>
      %65 = tpu.memref_slice %arg13[%45] : memref<2x!tpu.dma_semaphore, #tpu.memory_space<semaphore_mem>> -> memref<1x!tpu.dma_semaphore, #tpu.memory_space<semaphore_mem>>
      %66 = tpu.memref_squeeze %65 : memref<1x!tpu.dma_semaphore, #tpu.memory_space<semaphore_mem>> -> memref<!tpu.dma_semaphore, #tpu.memory_space<semaphore_mem>>
      tpu.wait_dma2 semaphore(%66 : memref<!tpu.dma_semaphore, #tpu.memory_space<semaphore_mem>>) src(%62 : memref<8x512xf32, #tpu.memory_space<any>>) dst(%64 : memref<8x512xf32, #tpu.memory_space<vmem>>)
      %67 = arith.index_cast %45 : i32 to index
      %c0_56 = arith.constant 0 : index
      %c0_57 = arith.constant 0 : index
      %68 = vector.load %arg10[%67, %c0_56, %c0_57] : memref<2x8x512xf32, #tpu.memory_space<vmem>>, vector<1x8x512xf32>
      %69 = vector.shape_cast %68 : vector<1x8x512xf32> to vector<8x512xf32>
      %c0_58 = arith.constant 0 : index
      %c0_59 = arith.constant 0 : index
      %70 = vector.load %arg12[%c0_58, %c0_59] : memref<8x256xbf16, #tpu.memory_space<vmem>>, vector<8x256xbf16>
      %cst_60 = arith.constant dense<0.000000e+00> : vector<8x512xf32>
      %71 = tpu.matmul %70, %18, %cst_60 {dimension_numbers = #tpu.dot_dimension_numbers<[1], [0], [0], [1], [0, 0, 1, 1], [], []>} : vector<8x256xbf16>, vector<256x512xbf16>, vector<8x512xf32> -> vector<8x512xf32>
      %72 = arith.addf %69, %71 : vector<8x512xf32>
      %73 = vector.extract_strided_slice %72 {offsets = [0, 0], sizes = [8, 128], strides = [1, 1]} : vector<8x512xf32> to vector<8x128xf32>
      %74 = arith.negf %73 : vector<8x128xf32>
      %75 = math.exp %74 : vector<8x128xf32>
      %cst_61 = arith.constant 1.000000e+00 : f32
      %76 = vector.broadcast %cst_61 : f32 to vector<8x128xf32>
      %77 = arith.addf %76, %75 : vector<8x128xf32>
      %78 = arith.divf %76, %77 : vector<8x128xf32>
      %79 = vector.extract_strided_slice %72 {offsets = [0, 128], sizes = [8, 128], strides = [1, 1]} : vector<8x512xf32> to vector<8x128xf32>
      %80 = arith.negf %79 : vector<8x128xf32>
      %81 = math.exp %80 : vector<8x128xf32>
      %cst_62 = arith.constant 1.000000e+00 : f32
      %82 = vector.broadcast %cst_62 : f32 to vector<8x128xf32>
      %83 = arith.addf %82, %81 : vector<8x128xf32>
      %84 = arith.divf %82, %83 : vector<8x128xf32>
      %85 = vector.extract_strided_slice %72 {offsets = [0, 256], sizes = [8, 128], strides = [1, 1]} : vector<8x512xf32> to vector<8x128xf32>
      %86 = math.tanh %85 : vector<8x128xf32>
      %87 = vector.extract_strided_slice %72 {offsets = [0, 384], sizes = [8, 128], strides = [1, 1]} : vector<8x512xf32> to vector<8x128xf32>
      %88 = arith.negf %87 : vector<8x128xf32>
      %89 = math.exp %88 : vector<8x128xf32>
      %cst_63 = arith.constant 1.000000e+00 : f32
      %90 = vector.broadcast %cst_63 : f32 to vector<8x128xf32>
      %91 = arith.addf %90, %89 : vector<8x128xf32>
      %92 = arith.divf %90, %91 : vector<8x128xf32>
      %93 = arith.mulf %84, %arg17 : vector<8x128xf32>
      %94 = arith.mulf %78, %86 : vector<8x128xf32>
      %95 = arith.addf %93, %94 : vector<8x128xf32>
      %96 = math.tanh %95 : vector<8x128xf32>
      %97 = arith.mulf %92, %96 : vector<8x128xf32>
      %c2_i32_64 = arith.constant 2 : i32
      %98 = arith.cmpi sge, %arg15, %c2_i32_64 : i32
      %99 = arith.extui %98 : i1 to i32
      %c0_i32_65 = arith.constant 0 : i32
      %100 = arith.cmpi ne, %99, %c0_i32_65 : i32
      scf.if %100 {
        %c0_i32_72 = arith.constant 0 : i32
        %c0_i32_73 = arith.constant 0 : i32
        %c0_i32_74 = arith.constant 0 : i32
        %112 = tpu.memref_slice %arg11[%45, %c0_i32_73, %c0_i32_74] : memref<2x8x128xbf16, #tpu.memory_space<vmem>> -> memref<1x8x128xbf16, #tpu.memory_space<vmem>>
        %113 = tpu.memref_squeeze %112 : memref<1x8x128xbf16, #tpu.memory_space<vmem>> -> memref<8x128xbf16, #tpu.memory_space<vmem>>
        %c0_i32_75 = arith.constant 0 : i32
        %c0_i32_76 = arith.constant 0 : i32
        %114 = tpu.memref_slice %arg9[%c0_i32_72, %c0_i32_75, %c0_i32_76] : memref<5x8x128xbf16, #tpu.memory_space<any>> -> memref<1x8x128xbf16, #tpu.memory_space<any>>
        %115 = tpu.memref_squeeze %114 : memref<1x8x128xbf16, #tpu.memory_space<any>> -> memref<8x128xbf16, #tpu.memory_space<any>>
        %116 = tpu.memref_slice %arg14[%45] : memref<2x!tpu.dma_semaphore, #tpu.memory_space<semaphore_mem>> -> memref<1x!tpu.dma_semaphore, #tpu.memory_space<semaphore_mem>>
        %117 = tpu.memref_squeeze %116 : memref<1x!tpu.dma_semaphore, #tpu.memory_space<semaphore_mem>> -> memref<!tpu.dma_semaphore, #tpu.memory_space<semaphore_mem>>
        tpu.wait_dma2 semaphore(%117 : memref<!tpu.dma_semaphore, #tpu.memory_space<semaphore_mem>>) src(%113 : memref<8x128xbf16, #tpu.memory_space<vmem>>) dst(%115 : memref<8x128xbf16, #tpu.memory_space<any>>)
      } else {
      }
      %101 = arith.truncf %97 : vector<8x128xf32> to vector<8x128xbf16>
      %102 = arith.index_cast %45 : i32 to index
      %c0_66 = arith.constant 0 : index
      %c0_67 = arith.constant 0 : index
      %103 = vector.load %arg11[%102, %c0_66, %c0_67] : memref<2x8x128xbf16, #tpu.memory_space<vmem>>, vector<1x8x128xbf16>
      %104 = vector.shape_cast %103 : vector<1x8x128xbf16> to vector<8x128xbf16>
      %105 = vector.shape_cast %101 : vector<8x128xbf16> to vector<1x8x128xbf16>
      tpu.vector_store %arg11[%102, %c0_66, %c0_67], %105 {strides = array<i32>} : memref<2x8x128xbf16, #tpu.memory_space<vmem>>, vector<1x8x128xbf16>,
      %c0_i32_68 = arith.constant 0 : i32
      %c0_i32_69 = arith.constant 0 : i32
      %106 = tpu.memref_slice %arg11[%45, %c0_i32_68, %c0_i32_69] : memref<2x8x128xbf16, #tpu.memory_space<vmem>> -> memref<1x8x128xbf16, #tpu.memory_space<vmem>>
      %107 = tpu.memref_squeeze %106 : memref<1x8x128xbf16, #tpu.memory_space<vmem>> -> memref<8x128xbf16, #tpu.memory_space<vmem>>
      %c0_i32_70 = arith.constant 0 : i32
      %c0_i32_71 = arith.constant 0 : i32
      %108 = tpu.memref_slice %arg9[%arg15, %c0_i32_70, %c0_i32_71] : memref<5x8x128xbf16, #tpu.memory_space<any>> -> memref<1x8x128xbf16, #tpu.memory_space<any>>
      %109 = tpu.memref_squeeze %108 : memref<1x8x128xbf16, #tpu.memory_space<any>> -> memref<8x128xbf16, #tpu.memory_space<any>>
      %110 = tpu.memref_slice %arg14[%45] : memref<2x!tpu.dma_semaphore, #tpu.memory_space<semaphore_mem>> -> memref<1x!tpu.dma_semaphore, #tpu.memory_space<semaphore_mem>>
      %111 = tpu.memref_squeeze %110 : memref<1x!tpu.dma_semaphore, #tpu.memory_space<semaphore_mem>> -> memref<!tpu.dma_semaphore, #tpu.memory_space<semaphore_mem>>
      tpu.enqueue_dma source(%107 : memref<8x128xbf16, #tpu.memory_space<vmem>>) target(%109 : memref<8x128xbf16, #tpu.memory_space<any>>) target_semaphore(%111 : memref<!tpu.dma_semaphore, #tpu.memory_space<semaphore_mem>>)
      scf.yield %97, %95 : vector<8x128xf32>, vector<8x128xf32>
    }
    %c5_i32_23 = arith.constant 5 : i32
    %c1_i32_24 = arith.constant 1 : i32
    %c0_i32_25 = arith.constant 0 : i32
    %c1_i32_26 = arith.constant 1 : i32
    %c0_i32_27 = arith.constant 0 : i32
    %c0_i32_28 = arith.constant 0 : i32
    %24 = tpu.memref_slice %arg11[%c1_i32_24, %c0_i32_27, %c0_i32_28] : memref<2x8x128xbf16, #tpu.memory_space<vmem>> -> memref<1x8x128xbf16, #tpu.memory_space<vmem>>
    %25 = tpu.memref_squeeze %24 : memref<1x8x128xbf16, #tpu.memory_space<vmem>> -> memref<8x128xbf16, #tpu.memory_space<vmem>>
    %c0_i32_29 = arith.constant 0 : i32
    %c0_i32_30 = arith.constant 0 : i32
    %26 = tpu.memref_slice %arg9[%c0_i32_25, %c0_i32_29, %c0_i32_30] : memref<5x8x128xbf16, #tpu.memory_space<any>> -> memref<1x8x128xbf16, #tpu.memory_space<any>>
    %27 = tpu.memref_squeeze %26 : memref<1x8x128xbf16, #tpu.memory_space<any>> -> memref<8x128xbf16, #tpu.memory_space<any>>
    %28 = tpu.memref_slice %arg14[%c1_i32_26] : memref<2x!tpu.dma_semaphore, #tpu.memory_space<semaphore_mem>> -> memref<1x!tpu.dma_semaphore, #tpu.memory_space<semaphore_mem>>
    %29 = tpu.memref_squeeze %28 : memref<1x!tpu.dma_semaphore, #tpu.memory_space<semaphore_mem>> -> memref<!tpu.dma_semaphore, #tpu.memory_space<semaphore_mem>>
    tpu.wait_dma2 semaphore(%29 : memref<!tpu.dma_semaphore, #tpu.memory_space<semaphore_mem>>) src(%25 : memref<8x128xbf16, #tpu.memory_space<vmem>>) dst(%27 : memref<8x128xbf16, #tpu.memory_space<any>>)
    %c0_i32_31 = arith.constant 0 : i32
    %c0_i32_32 = arith.constant 0 : i32
    %c0_i32_33 = arith.constant 0 : i32
    %c0_i32_34 = arith.constant 0 : i32
    %c0_i32_35 = arith.constant 0 : i32
    %30 = tpu.memref_slice %arg11[%c0_i32_31, %c0_i32_34, %c0_i32_35] : memref<2x8x128xbf16, #tpu.memory_space<vmem>> -> memref<1x8x128xbf16, #tpu.memory_space<vmem>>
    %31 = tpu.memref_squeeze %30 : memref<1x8x128xbf16, #tpu.memory_space<vmem>> -> memref<8x128xbf16, #tpu.memory_space<vmem>>
    %c0_i32_36 = arith.constant 0 : i32
    %c0_i32_37 = arith.constant 0 : i32
    %32 = tpu.memref_slice %arg9[%c0_i32_32, %c0_i32_36, %c0_i32_37] : memref<5x8x128xbf16, #tpu.memory_space<any>> -> memref<1x8x128xbf16, #tpu.memory_space<any>>
    %33 = tpu.memref_squeeze %32 : memref<1x8x128xbf16, #tpu.memory_space<any>> -> memref<8x128xbf16, #tpu.memory_space<any>>
    %34 = tpu.memref_slice %arg14[%c0_i32_33] : memref<2x!tpu.dma_semaphore, #tpu.memory_space<semaphore_mem>> -> memref<1x!tpu.dma_semaphore, #tpu.memory_space<semaphore_mem>>
    %35 = tpu.memref_squeeze %34 : memref<1x!tpu.dma_semaphore, #tpu.memory_space<semaphore_mem>> -> memref<!tpu.dma_semaphore, #tpu.memory_space<semaphore_mem>>
    tpu.wait_dma2 semaphore(%35 : memref<!tpu.dma_semaphore, #tpu.memory_space<semaphore_mem>>) src(%31 : memref<8x128xbf16, #tpu.memory_space<vmem>>) dst(%33 : memref<8x128xbf16, #tpu.memory_space<any>>)
    return
  }
}

module attributes {stable_mosaic.version = 11 : i64} {
  func.func @fc_kernel(%arg0: i32, %arg1: i32, %arg2: memref<40x128xbf16, #tpu.memory_space<vmem>>, %arg3: memref<128x256xbf16, #tpu.memory_space<vmem>>, %arg4: memref<1x256xf32, #tpu.memory_space<vmem>>, %arg5: memref<40x1xf32, #tpu.memory_space<vmem>>, %arg6: memref<40x256xf32, #tpu.memory_space<vmem>>) attributes {dimension_semantics = [#tpu.dimension_semantics<parallel>, #tpu.dimension_semantics<parallel>], iteration_bounds = array<i64: 1, 1>, scalar_prefetch = 0 : i64, scratch_operands = 0 : i64, tpu.core_type = #tpu.core_type<tc>, window_params = [{transform_indices = @transform_0, window_bounds = array<i64: 40, 128>}, {transform_indices = @transform_1, window_bounds = array<i64: 128, 256>}, {transform_indices = @transform_2, window_bounds = array<i64: 1, 256>}, {transform_indices = @transform_3, window_bounds = array<i64: 40, 1>}, {transform_indices = @transform_4, window_bounds = array<i64: 40, 256>}]} {
    %c0 = arith.constant 0 : index
    %c0_0 = arith.constant 0 : index
    %0 = vector.load %arg2[%c0, %c0_0] : memref<40x128xbf16, #tpu.memory_space<vmem>>, vector<40x128xbf16>
    %c0_1 = arith.constant 0 : index
    %c0_2 = arith.constant 0 : index
    %1 = vector.load %arg3[%c0_1, %c0_2] : memref<128x256xbf16, #tpu.memory_space<vmem>>, vector<128x256xbf16>
    %cst = arith.constant dense<0.000000e+00> : vector<40x256xf32>
    %2 = tpu.matmul %0, %1, %cst {dimension_numbers = #tpu.dot_dimension_numbers<[1], [0], [0], [1], [0, 0, 1, 1], [], []>} : vector<40x128xbf16>, vector<128x256xbf16>, vector<40x256xf32> -> vector<40x256xf32>
    %c0_3 = arith.constant 0 : index
    %c0_4 = arith.constant 0 : index
    %3 = vector.load %arg4[%c0_3, %c0_4] : memref<1x256xf32, #tpu.memory_space<vmem>>, vector<1x256xf32>
    %4 = vector.broadcast %3 : vector<1x256xf32> to vector<40x256xf32>
    %5 = arith.addf %2, %4 : vector<40x256xf32>
    %c0_5 = arith.constant 0 : index
    %c0_6 = arith.constant 0 : index
    %6 = vector.load %arg5[%c0_5, %c0_6] : memref<40x1xf32, #tpu.memory_space<vmem>>, vector<40x1xf32>
    %7 = vector.broadcast %6 : vector<40x1xf32> to vector<40x256xf32>
    %8 = arith.mulf %5, %7 : vector<40x256xf32>
    %c0_7 = arith.constant 0 : index
    %c0_8 = arith.constant 0 : index
    %9 = vector.load %arg6[%c0_7, %c0_8] : memref<40x256xf32, #tpu.memory_space<vmem>>, vector<40x256xf32>
    tpu.vector_store %arg6[%c0_7, %c0_8], %8 {strides = array<i32>} : memref<40x256xf32, #tpu.memory_space<vmem>>, vector<40x256xf32>,
    return
  }
  func.func @transform_0(%arg0: i32, %arg1: i32) -> (i32, i32) {
    %c0_i32 = arith.constant 0 : i32
    %c0_i32_0 = arith.constant 0 : i32
    return %arg1, %c0_i32 : i32, i32
  }
  func.func @transform_1(%arg0: i32, %arg1: i32) -> (i32, i32) {
    %c0_i32 = arith.constant 0 : i32
    %c0_i32_0 = arith.constant 0 : i32
    return %c0_i32, %arg0 : i32, i32
  }
  func.func @transform_2(%arg0: i32, %arg1: i32) -> (i32, i32) {
    %c0_i32 = arith.constant 0 : i32
    %c0_i32_0 = arith.constant 0 : i32
    return %c0_i32, %arg0 : i32, i32
  }
  func.func @transform_3(%arg0: i32, %arg1: i32) -> (i32, i32) {
    %c0_i32 = arith.constant 0 : i32
    %c0_i32_0 = arith.constant 0 : i32
    return %arg1, %c0_i32 : i32, i32
  }
  func.func @transform_4(%arg0: i32, %arg1: i32) -> (i32, i32) {
    %c0_i32 = arith.constant 0 : i32
    return %arg1, %arg0 : i32, i32
  }
}

</mosaic_0001>

<llo_original>
// kernel: _decoder_forward_impl.3
$region0: #{_decoder_forward_impl.3}
  #allocation0 [shape = 'u32[]', space=smem, size = 0x4, offset = 0x4, fixed_abs, tag = 'smem constant byte address 0x4 - core index']
  #allocation1 [shape = 'u32[72,128]{1,0:T(1,128)}', space=vmem, size = 0x9000, scoped, tag = 'internal scratch']
  %s0 = inlined_call_operand.vmem [shape: bf16[40,128], index: 0, kind: input, shape index: {}]
  %s1 = inlined_call_operand.vmem [shape: bf16[128,512], index: 1, kind: input, shape index: {}]
  %s2 = inlined_call_operand.vmem [shape: f32[1,512], index: 2, kind: input, shape index: {}]
  %s3 = inlined_call_operand.vmem [shape: f32[40,512], index: 3, kind: output, shape index: {}]
  %s4 = sld [smem:[#allocation0]]
  $region22: #{_decoder_forward_impl.3} parent=0
    _
  %s6 = ssub.s32 1, %s4
  %s7 = scalar_select 0, %s6, %s4
  // Predicated region
  $region2: #{_decoder_forward_impl.3} parent=0 // pred_check
    _
  $region3: #{_decoder_forward_impl.3} parent=0 // pred_check_branch
    %9 = sbr.rel (0) target = $region5
  $region4: #{_decoder_forward_impl.3} parent=0 // pred_region
    _
  $region5: #{_decoder_forward_impl.3} parent=0 // pred_fallthru
    _
  // Predicated region
  $region6: #{_decoder_forward_impl.3} parent=0 // pred_check
    _
  $region7: #{_decoder_forward_impl.3} parent=0 // pred_check_branch
    %11 = sbr.rel (0) target = $region9
  $region8: #{_decoder_forward_impl.3} parent=0 // pred_region
    _
  $region9: #{_decoder_forward_impl.3} parent=0 // pred_fallthru
    _
  // Predicated region
  $region10: #{_decoder_forward_impl.3} parent=0 // pred_check
    _
  $region11: #{_decoder_forward_impl.3} parent=0 // pred_check_branch
    %13 = sbr.rel (0) target = $region13
  $region12: #{_decoder_forward_impl.3} parent=0 // pred_region
    _
  $region13: #{_decoder_forward_impl.3} parent=0 // pred_fallthru
    _
  %v14 = vld [vmem:[%s0] sm:$0xf]
  %v15 = vld [vmem:[%s0 + $0x4] sm:$0xf]
  %v16 = vld [vmem:[%s0 + $0x8] sm:$0xf]
  %v17 = vld [vmem:[%s0 + $0xc] sm:$0xf]
  %v18 = vld [vmem:[%s0 + $0x10] sm:$0xf]
  %v19 = vld [vmem:[%s1] sm:$0xff]
  %v20 = vld [vmem:[%s1 + $0x8] sm:$0xff]
  %v21 = vld [vmem:[%s1 + $0x10] sm:$0xff]
  %v22 = vld [vmem:[%s1 + $0x18] sm:$0xff]
  %v23 = vld [vmem:[%s1 + $0x20] sm:$0xff]
  %v24 = vld [vmem:[%s1 + $0x28] sm:$0xff]
  %v25 = vld [vmem:[%s1 + $0x30] sm:$0xff]
  %v26 = vld [vmem:[%s1 + $0x38] sm:$0xff]
  %v27 = vld [vmem:[%s1 + $0x40] sm:$0xff]
  %v28 = vld [vmem:[%s1 + $0x48] sm:$0xff]
  %v29 = vld [vmem:[%s1 + $0x50] sm:$0xff]
  %v30 = vld [vmem:[%s1 + $0x58] sm:$0xff]
  %v31 = vld [vmem:[%s1 + $0x60] sm:$0xff]
  %v32 = vld [vmem:[%s1 + $0x68] sm:$0xff]
  %v33 = vld [vmem:[%s1 + $0x70] sm:$0xff]
  %v34 = vld [vmem:[%s1 + $0x78] sm:$0xff]
  %v35 = vld [vmem:[%s1 + $0x80] sm:$0xff]
  %v36 = vld [vmem:[%s1 + $0x88] sm:$0xff]
  %v37 = vld [vmem:[%s1 + $0x90] sm:$0xff]
  %v38 = vld [vmem:[%s1 + $0x98] sm:$0xff]
  %v39 = vld [vmem:[%s1 + $0xa0] sm:$0xff]
  %v40 = vld [vmem:[%s1 + $0xa8] sm:$0xff]
  %v41 = vld [vmem:[%s1 + $0xb0] sm:$0xff]
  %v42 = vld [vmem:[%s1 + $0xb8] sm:$0xff]
  %v43 = vld [vmem:[%s1 + $0xc0] sm:$0xff]
  %v44 = vld [vmem:[%s1 + $0xc8] sm:$0xff]
  %v45 = vld [vmem:[%s1 + $0xd0] sm:$0xff]
  %v46 = vld [vmem:[%s1 + $0xd8] sm:$0xff]
  %v47 = vld [vmem:[%s1 + $0xe0] sm:$0xff]
  %v48 = vld [vmem:[%s1 + $0xe8] sm:$0xff]
  %v49 = vld [vmem:[%s1 + $0xf0] sm:$0xff]
  %v50 = vld [vmem:[%s1 + $0xf8] sm:$0xff]
  %v51 = vld [vmem:[%s2] sm:$0xf]
  %v53 = vperm.slane %v51, 0
  %v54 = vperm.slane %v51, 1
  %v55 = vperm.slane %v51, 2
  %v56 = vperm.slane %v51, 3
  %v66 = vunpack.c.l.b16 %v14
  %v67 = vunpack.c.l.b16 %v15
  %v68 = vunpack.c.l.b16 %v16
  %v69 = vunpack.c.l.b16 %v17
  %v70 = vunpack.c.l.b16 %v18
  %v71 = vpack.c.b16 %v67, %v66
  %v72 = vpack.c.b16 %v69, %v68
  %v73 = vpack.c.b16 %v70, %v70
  %v109 = vunpack.c.l.b16 %v19
  %v110 = vunpack.c.h.b16 %v19
  %v111 = vunpack.c.l.b16 %v20
  %v112 = vunpack.c.h.b16 %v20
  %v113 = vunpack.c.l.b16 %v21
  %v114 = vunpack.c.h.b16 %v21
  %v115 = vunpack.c.l.b16 %v22
  %v116 = vunpack.c.h.b16 %v22
  %v117 = vunpack.c.l.b16 %v23
  %v118 = vunpack.c.h.b16 %v23
  %v119 = vunpack.c.l.b16 %v24
  %v120 = vunpack.c.h.b16 %v24
  %v121 = vunpack.c.l.b16 %v25
  %v122 = vunpack.c.h.b16 %v25
  %v123 = vunpack.c.l.b16 %v26
  %v124 = vunpack.c.h.b16 %v26
  %v125 = vunpack.c.l.b16 %v27
  %v126 = vunpack.c.h.b16 %v27
  %v127 = vunpack.c.l.b16 %v28
  %v128 = vunpack.c.h.b16 %v28
  %v129 = vunpack.c.l.b16 %v29
  %v130 = vunpack.c.h.b16 %v29
  %v131 = vunpack.c.l.b16 %v30
  %v132 = vunpack.c.h.b16 %v30
  %v133 = vunpack.c.l.b16 %v31
  %v134 = vunpack.c.h.b16 %v31
  %v135 = vunpack.c.l.b16 %v32
  %v136 = vunpack.c.h.b16 %v32
  %v137 = vunpack.c.l.b16 %v33
  %v138 = vunpack.c.h.b16 %v33
  %v139 = vunpack.c.l.b16 %v34
  %v140 = vunpack.c.h.b16 %v34
  %v141 = vunpack.c.l.b16 %v35
  %v142 = vunpack.c.h.b16 %v35
  %v143 = vunpack.c.l.b16 %v36
  %v144 = vunpack.c.h.b16 %v36
  %v145 = vunpack.c.l.b16 %v37
  %v146 = vunpack.c.h.b16 %v37
  %v147 = vunpack.c.l.b16 %v38
  %v148 = vunpack.c.h.b16 %v38
  %v149 = vunpack.c.l.b16 %v39
  %v150 = vunpack.c.h.b16 %v39
  %v151 = vunpack.c.l.b16 %v40
  %v152 = vunpack.c.h.b16 %v40
  %v153 = vunpack.c.l.b16 %v41
  %v154 = vunpack.c.h.b16 %v41
  %v155 = vunpack.c.l.b16 %v42
  %v156 = vunpack.c.h.b16 %v42
  %v157 = vunpack.c.l.b16 %v43
  %v158 = vunpack.c.h.b16 %v43
  %v159 = vunpack.c.l.b16 %v44
  %v160 = vunpack.c.h.b16 %v44
  %v161 = vunpack.c.l.b16 %v45
  %v162 = vunpack.c.h.b16 %v45
  %v163 = vunpack.c.l.b16 %v46
  %v164 = vunpack.c.h.b16 %v46
  %v165 = vunpack.c.l.b16 %v47
  %v166 = vunpack.c.h.b16 %v47
  %v167 = vunpack.c.l.b16 %v48
  %v168 = vunpack.c.h.b16 %v48
  %v169 = vunpack.c.l.b16 %v49
  %v170 = vunpack.c.h.b16 %v49
  %v171 = vunpack.c.l.b16 %v50
  %v172 = vunpack.c.h.b16 %v50
  %v173 = vpack.c.b16 %v113, %v109
  %v174 = vpack.c.b16 %v114, %v110
  %v175 = vpack.c.b16 %v115, %v111
  %v176 = vpack.c.b16 %v116, %v112
  %v177 = vpack.c.b16 %v121, %v117
  %v178 = vpack.c.b16 %v122, %v118
  %v179 = vpack.c.b16 %v123, %v119
  %v180 = vpack.c.b16 %v124, %v120
  %v181 = vpack.c.b16 %v129, %v125
  %v182 = vpack.c.b16 %v130, %v126
  %v183 = vpack.c.b16 %v131, %v127
  %v184 = vpack.c.b16 %v132, %v128
  %v185 = vpack.c.b16 %v137, %v133
  %v186 = vpack.c.b16 %v138, %v134
  %v187 = vpack.c.b16 %v139, %v135
  %v188 = vpack.c.b16 %v140, %v136
  %v189 = vpack.c.b16 %v145, %v141
  %v190 = vpack.c.b16 %v146, %v142
  %v191 = vpack.c.b16 %v147, %v143
  %v192 = vpack.c.b16 %v148, %v144
  %v193 = vpack.c.b16 %v153, %v149
  %v194 = vpack.c.b16 %v154, %v150
  %v195 = vpack.c.b16 %v155, %v151
  %v196 = vpack.c.b16 %v156, %v152
  %v197 = vpack.c.b16 %v161, %v157
  %v198 = vpack.c.b16 %v162, %v158
  %v199 = vpack.c.b16 %v163, %v159
  %v200 = vpack.c.b16 %v164, %v160
  %v201 = vpack.c.b16 %v169, %v165
  %v202 = vpack.c.b16 %v170, %v166
  %v203 = vpack.c.b16 %v171, %v167
  %v204 = vpack.c.b16 %v172, %v168
  %237 = vmatpush.bf16.msra.mxu0 %v201
  %238 = vmatpush.bf16.msra.mxu0 %v197
  %239 = vmatpush.bf16.msra.mxu0 %v193
  %240 = vmatpush.bf16.msra.mxu0 %v189
  %241 = vmatpush.bf16.msra.mxu0 %v185
  %242 = vmatpush.bf16.msra.mxu0 %v181
  %243 = vmatpush.bf16.msra.mxu0 %v177
  %244 = vmatpush.bf16.msra.mxu0 %v173
  %245 = vmatmul.bf16.gmra.mxu0 %v71
  %v246 = vpop.f32.mrf.mxu0
  %v247 = vadd.f32 %v53, %v246
  %v248 = vpop.f32.mrf.mxu0
  %v249 = vadd.f32 %v53, %v248
  %250 = vmatmul.bf16.gmra.mxu0 %v72
  %v251 = vpop.f32.mrf.mxu0
  %v252 = vadd.f32 %v53, %v251
  %v253 = vpop.f32.mrf.mxu0
  %v254 = vadd.f32 %v53, %v253
  %255 = vmatmul.bf16.gmra.mxu0 %v73
  %v256 = vpop.f32.mrf.mxu0
  %v257 = vadd.f32 %v53, %v256
  %v258 = vpop.f32.mrf.mxu0
  %259 = vdwg.mxu0
  %260 = vmatpush.bf16.msra.mxu0 %v202
  %261 = vmatpush.bf16.msra.mxu0 %v198
  %262 = vmatpush.bf16.msra.mxu0 %v194
  %263 = vmatpush.bf16.msra.mxu0 %v190
  %264 = vmatpush.bf16.msra.mxu0 %v186
  %265 = vmatpush.bf16.msra.mxu0 %v182
  %266 = vmatpush.bf16.msra.mxu0 %v178
  %267 = vmatpush.bf16.msra.mxu0 %v174
  %268 = vmatmul.bf16.gmra.mxu0 %v71
  %v269 = vpop.f32.mrf.mxu0
  %v270 = vadd.f32 %v54, %v269
  %v271 = vpop.f32.mrf.mxu0
  %v272 = vadd.f32 %v54, %v271
  %273 = vmatmul.bf16.gmra.mxu0 %v72
  %v274 = vpop.f32.mrf.mxu0
  %v275 = vadd.f32 %v54, %v274
  %v276 = vpop.f32.mrf.mxu0
  %v277 = vadd.f32 %v54, %v276
  %278 = vmatmul.bf16.gmra.mxu0 %v73
  %v279 = vpop.f32.mrf.mxu0
  %v280 = vadd.f32 %v54, %v279
  %v281 = vpop.f32.mrf.mxu0
  %282 = vdwg.mxu0
  %283 = vmatpush.bf16.msra.mxu0 %v203
  %284 = vmatpush.bf16.msra.mxu0 %v199
  %285 = vmatpush.bf16.msra.mxu0 %v195
  %286 = vmatpush.bf16.msra.mxu0 %v191
  %287 = vmatpush.bf16.msra.mxu0 %v187
  %288 = vmatpush.bf16.msra.mxu0 %v183
  %289 = vmatpush.bf16.msra.mxu0 %v179
  %290 = vmatpush.bf16.msra.mxu0 %v175
  %291 = vmatmul.bf16.gmra.mxu0 %v71
  %v292 = vpop.f32.mrf.mxu0
  %v293 = vadd.f32 %v55, %v292
  %v294 = vpop.f32.mrf.mxu0
  %v295 = vadd.f32 %v55, %v294
  %296 = vmatmul.bf16.gmra.mxu0 %v72
  %v297 = vpop.f32.mrf.mxu0
  %v298 = vadd.f32 %v55, %v297
  %v299 = vpop.f32.mrf.mxu0
  %v300 = vadd.f32 %v55, %v299
  %301 = vmatmul.bf16.gmra.mxu0 %v73
  %v302 = vpop.f32.mrf.mxu0
  %v303 = vadd.f32 %v55, %v302
  %v304 = vpop.f32.mrf.mxu0
  %305 = vdwg.mxu0
  %306 = vmatpush.bf16.msra.mxu0 %v204
  %307 = vmatpush.bf16.msra.mxu0 %v200
  %308 = vmatpush.bf16.msra.mxu0 %v196
  %309 = vmatpush.bf16.msra.mxu0 %v192
  %310 = vmatpush.bf16.msra.mxu0 %v188
  %311 = vmatpush.bf16.msra.mxu0 %v184
  %312 = vmatpush.bf16.msra.mxu0 %v180
  %313 = vmatpush.bf16.msra.mxu0 %v176
  %314 = vmatmul.bf16.gmra.mxu0 %v71
  %v315 = vpop.f32.mrf.mxu0
  %v316 = vadd.f32 %v56, %v315
  %v317 = vpop.f32.mrf.mxu0
  %v318 = vadd.f32 %v56, %v317
  %319 = vmatmul.bf16.gmra.mxu0 %v72
  %v320 = vpop.f32.mrf.mxu0
  %v321 = vadd.f32 %v56, %v320
  %v322 = vpop.f32.mrf.mxu0
  %v323 = vadd.f32 %v56, %v322
  %324 = vmatmul.bf16.gmra.mxu0 %v73
  %v325 = vpop.f32.mrf.mxu0
  %v326 = vadd.f32 %v56, %v325
  %v327 = vpop.f32.mrf.mxu0
  %328 = vdwg.mxu0
  %329 = vst [vmem:[%s3] sm:$0xff] %v247
  %330 = vst [vmem:[%s3 + $0x8] sm:$0xff] %v270
  %331 = vst [vmem:[%s3 + $0x10] sm:$0xff] %v293
  %332 = vst [vmem:[%s3 + $0x18] sm:$0xff] %v316
  %333 = vst [vmem:[%s3 + $0x20] sm:$0xff] %v249
  %334 = vst [vmem:[%s3 + $0x28] sm:$0xff] %v272
  %335 = vst [vmem:[%s3 + $0x30] sm:$0xff] %v295
  %336 = vst [vmem:[%s3 + $0x38] sm:$0xff] %v318
  %337 = vst [vmem:[%s3 + $0x40] sm:$0xff] %v252
  %338 = vst [vmem:[%s3 + $0x48] sm:$0xff] %v275
  %339 = vst [vmem:[%s3 + $0x50] sm:$0xff] %v298
  %340 = vst [vmem:[%s3 + $0x58] sm:$0xff] %v321
  %341 = vst [vmem:[%s3 + $0x60] sm:$0xff] %v254
  %342 = vst [vmem:[%s3 + $0x68] sm:$0xff] %v277
  %343 = vst [vmem:[%s3 + $0x70] sm:$0xff] %v300
  %344 = vst [vmem:[%s3 + $0x78] sm:$0xff] %v323
  %345 = vst [vmem:[%s3 + $0x80] sm:$0xff] %v257
  %346 = vst [vmem:[%s3 + $0x88] sm:$0xff] %v280
  %347 = vst [vmem:[%s3 + $0x90] sm:$0xff] %v303
  %348 = vst [vmem:[%s3 + $0x98] sm:$0xff] %v326
  // Predicated region
  $region14: #{_decoder_forward_impl.3} parent=0 // pred_check
    _
  $region15: #{_decoder_forward_impl.3} parent=0 // pred_check_branch
    %350 = sbr.rel (0) target = $region17
  $region16: #{_decoder_forward_impl.3} parent=0 // pred_region
    _
  $region17: #{_decoder_forward_impl.3} parent=0 // pred_fallthru
    _
  // Predicated region
  $region18: #{_decoder_forward_impl.3} parent=0 // pred_check
    _
  $region19: #{_decoder_forward_impl.3} parent=0 // pred_check_branch
    %352 = sbr.rel (0) target = $region21
  $region20: #{_decoder_forward_impl.3} parent=0 // pred_region
    _
  $region21: #{_decoder_forward_impl.3} parent=0 // pred_fallthru
    _

// kernel: _decoder_forward_impl.5
$region0: #{_decoder_forward_impl.5}
  #allocation0 [shape = 'u32[]', space=smem, size = 0x4, offset = 0x4, fixed_abs, tag = 'smem constant byte address 0x4 - core index']
  #allocation1 [shape = 'u32[72,128]{1,0:T(1,128)}', space=vmem, size = 0x9000, scoped, tag = 'internal scratch']
  %s0 = inlined_call_operand.vmem [shape: bf16[40,128], index: 0, kind: input, shape index: {}]
  %s1 = inlined_call_operand.vmem [shape: bf16[128,256], index: 1, kind: input, shape index: {}]
  %s2 = inlined_call_operand.vmem [shape: f32[1,256], index: 2, kind: input, shape index: {}]
  %s3 = inlined_call_operand.vmem [shape: f32[40,1], index: 3, kind: input, shape index: {}]
  %s4 = inlined_call_operand.hbm [shape: f32[40,256], index: 4, kind: output, shape index: {}]
  %s5 = sld [smem:[#allocation0]]
  $region26: #{_decoder_forward_impl.5} parent=0
    _
  %s7 = ssub.s32 1, %s5
  %s8 = scalar_select 0, %s7, %s5
  $region1: #{_decoder_forward_impl.5} parent=0
    #allocation2 [shape = 'u8[40960]{0}', space=vmem, size = 0xa000, scoped, tag = 'output window, operand 0, single buffered']
    #allocation3 [shape = 's32[1]{0}', space=sflag, size = 0x4, scoped, tag = 'scoped memory for _decoder_forward_impl.5']
    %9 = vsyncpa [#allocation3], 0
    // Predicated region
    $region2: #{_decoder_forward_impl.5} parent=1 // pred_check
      _
    $region3: #{_decoder_forward_impl.5} parent=1 // pred_check_branch
      %11 = sbr.rel (0) target = $region5
    $region4: #{_decoder_forward_impl.5} parent=1 // pred_region
      _
    $region5: #{_decoder_forward_impl.5} parent=1 // pred_fallthru
      _
    // Predicated region
    $region6: #{_decoder_forward_impl.5} parent=1 // pred_check
      _
    $region7: #{_decoder_forward_impl.5} parent=1 // pred_check_branch
      %13 = sbr.rel (0) target = $region9
    $region8: #{_decoder_forward_impl.5} parent=1 // pred_region
      _
    $region9: #{_decoder_forward_impl.5} parent=1 // pred_fallthru
      _
    // Predicated region
    $region10: #{_decoder_forward_impl.5} parent=1 // pred_check
      _
    $region11: #{_decoder_forward_impl.5} parent=1 // pred_check_branch
      %15 = sbr.rel (0) target = $region13
    $region12: #{_decoder_forward_impl.5} parent=1 // pred_region
      _
    $region13: #{_decoder_forward_impl.5} parent=1 // pred_fallthru
      _
    // Predicated region
    $region14: #{_decoder_forward_impl.5} parent=1 // pred_check
      _
    $region15: #{_decoder_forward_impl.5} parent=1 // pred_check_branch
      %17 = sbr.rel (0) target = $region17
    $region16: #{_decoder_forward_impl.5} parent=1 // pred_region
      _
    $region17: #{_decoder_forward_impl.5} parent=1 // pred_fallthru
      _
    %v18 = vld [vmem:[%s0] sm:$0xf]
    %v19 = vld [vmem:[%s0 + $0x4] sm:$0xf]
    %v20 = vld [vmem:[%s0 + $0x8] sm:$0xf]
    %v21 = vld [vmem:[%s0 + $0xc] sm:$0xf]
    %v22 = vld [vmem:[%s0 + $0x10] sm:$0xf]
    %v23 = vld [vmem:[%s1] sm:$0xff]
    %v24 = vld [vmem:[%s1 + $0x8] sm:$0xff]
    %v25 = vld [vmem:[%s1 + $0x10] sm:$0xff]
    %v26 = vld [vmem:[%s1 + $0x18] sm:$0xff]
    %v27 = vld [vmem:[%s1 + $0x20] sm:$0xff]
    %v28 = vld [vmem:[%s1 + $0x28] sm:$0xff]
    %v29 = vld [vmem:[%s1 + $0x30] sm:$0xff]
    %v30 = vld [vmem:[%s1 + $0x38] sm:$0xff]
    %v31 = vld [vmem:[%s1 + $0x40] sm:$0xff]
    %v32 = vld [vmem:[%s1 + $0x48] sm:$0xff]
    %v33 = vld [vmem:[%s1 + $0x50] sm:$0xff]
    %v34 = vld [vmem:[%s1 + $0x58] sm:$0xff]
    %v35 = vld [vmem:[%s1 + $0x60] sm:$0xff]
    %v36 = vld [vmem:[%s1 + $0x68] sm:$0xff]
    %v37 = vld [vmem:[%s1 + $0x70] sm:$0xff]
    %v38 = vld [vmem:[%s1 + $0x78] sm:$0xff]
    %v39 = vld [vmem:[%s2] sm:$0x3]
    %v41 = vperm.slane %v39, 0
    %v42 = vperm.slane %v39, 1
    %v50 = vunpack.c.l.b16 %v18
    %v51 = vunpack.c.l.b16 %v19
    %v52 = vunpack.c.l.b16 %v20
    %v53 = vunpack.c.l.b16 %v21
    %v54 = vunpack.c.l.b16 %v22
    %v55 = vpack.c.b16 %v51, %v50
    %v56 = vpack.c.b16 %v53, %v52
    %v57 = vpack.c.b16 %v54, %v54
    %v77 = vunpack.c.l.b16 %v23
    %v78 = vunpack.c.h.b16 %v23
    %v79 = vunpack.c.l.b16 %v24
    %v80 = vunpack.c.h.b16 %v24
    %v81 = vunpack.c.l.b16 %v25
    %v82 = vunpack.c.h.b16 %v25
    %v83 = vunpack.c.l.b16 %v26
    %v84 = vunpack.c.h.b16 %v26
    %v85 = vunpack.c.l.b16 %v27
    %v86 = vunpack.c.h.b16 %v27
    %v87 = vunpack.c.l.b16 %v28
    %v88 = vunpack.c.h.b16 %v28
    %v89 = vunpack.c.l.b16 %v29
    %v90 = vunpack.c.h.b16 %v29
    %v91 = vunpack.c.l.b16 %v30
    %v92 = vunpack.c.h.b16 %v30
    %v93 = vunpack.c.l.b16 %v31
    %v94 = vunpack.c.h.b16 %v31
    %v95 = vunpack.c.l.b16 %v32
    %v96 = vunpack.c.h.b16 %v32
    %v97 = vunpack.c.l.b16 %v33
    %v98 = vunpack.c.h.b16 %v33
    %v99 = vunpack.c.l.b16 %v34
    %v100 = vunpack.c.h.b16 %v34
    %v101 = vunpack.c.l.b16 %v35
    %v102 = vunpack.c.h.b16 %v35
    %v103 = vunpack.c.l.b16 %v36
    %v104 = vunpack.c.h.b16 %v36
    %v105 = vunpack.c.l.b16 %v37
    %v106 = vunpack.c.h.b16 %v37
    %v107 = vunpack.c.l.b16 %v38
    %v108 = vunpack.c.h.b16 %v38
    %v109 = vpack.c.b16 %v79, %v77
    %v110 = vpack.c.b16 %v80, %v78
    %v111 = vpack.c.b16 %v83, %v81
    %v112 = vpack.c.b16 %v84, %v82
    %v113 = vpack.c.b16 %v87, %v85
    %v114 = vpack.c.b16 %v88, %v86
    %v115 = vpack.c.b16 %v91, %v89
    %v116 = vpack.c.b16 %v92, %v90
    %v117 = vpack.c.b16 %v95, %v93
    %v118 = vpack.c.b16 %v96, %v94
    %v119 = vpack.c.b16 %v99, %v97
    %v120 = vpack.c.b16 %v100, %v98
    %v121 = vpack.c.b16 %v103, %v101
    %v122 = vpack.c.b16 %v104, %v102
    %v123 = vpack.c.b16 %v107, %v105
    %v124 = vpack.c.b16 %v108, %v106
    %141 = vmatpush.bf16.msra.mxu0 %v123
    %142 = vmatpush.bf16.msra.mxu0 %v121
    %143 = vmatpush.bf16.msra.mxu0 %v119
    %144 = vmatpush.bf16.msra.mxu0 %v117
    %145 = vmatpush.bf16.msra.mxu0 %v115
    %146 = vmatpush.bf16.msra.mxu0 %v113
    %147 = vmatpush.bf16.msra.mxu0 %v111
    %148 = vmatpush.bf16.msra.mxu0 %v109
    %149 = vmatmul.bf16.gmra.mxu0 %v55
    %v150 = vpop.f32.mrf.mxu0
    %v151 = vadd.f32 %v41, %v150
    %v152 = vpop.f32.mrf.mxu0
    %v153 = vadd.f32 %v41, %v152
    %154 = vmatmul.bf16.gmra.mxu0 %v56
    %v155 = vpop.f32.mrf.mxu0
    %v156 = vadd.f32 %v41, %v155
    %v157 = vpop.f32.mrf.mxu0
    %v158 = vadd.f32 %v41, %v157
    %159 = vmatmul.bf16.gmra.mxu0 %v57
    %v160 = vpop.f32.mrf.mxu0
    %v161 = vadd.f32 %v41, %v160
    %v162 = vpop.f32.mrf.mxu0
    %163 = vdwg.mxu0
    %164 = vmatpush.bf16.msra.mxu0 %v124
    %165 = vmatpush.bf16.msra.mxu0 %v122
    %166 = vmatpush.bf16.msra.mxu0 %v120
    %167 = vmatpush.bf16.msra.mxu0 %v118
    %168 = vmatpush.bf16.msra.mxu0 %v116
    %169 = vmatpush.bf16.msra.mxu0 %v114
    %170 = vmatpush.bf16.msra.mxu0 %v112
    %171 = vmatpush.bf16.msra.mxu0 %v110
    %172 = vmatmul.bf16.gmra.mxu0 %v55
    %v173 = vpop.f32.mrf.mxu0
    %v174 = vadd.f32 %v42, %v173
    %v175 = vpop.f32.mrf.mxu0
    %v176 = vadd.f32 %v42, %v175
    %177 = vmatmul.bf16.gmra.mxu0 %v56
    %v178 = vpop.f32.mrf.mxu0
    %v179 = vadd.f32 %v42, %v178
    %v180 = vpop.f32.mrf.mxu0
    %v181 = vadd.f32 %v42, %v180
    %182 = vmatmul.bf16.gmra.mxu0 %v57
    %v183 = vpop.f32.mrf.mxu0
    %v184 = vadd.f32 %v42, %v183
    %v185 = vpop.f32.mrf.mxu0
    %186 = vdwg.mxu0
    %v187 = vld [vmem:[%s3] sm:$0xff]
    %v188 = vld [vmem:[%s3 + $0x8] sm:$0xff]
    %v189 = vld [vmem:[%s3 + $0x10] sm:$0xff]
    %v190 = vld [vmem:[%s3 + $0x18] sm:$0xff]
    %v191 = vld [vmem:[%s3 + $0x20] sm:$0xff]
    %193 = vset.pattern.permute.xlu0 0
    %194 = vperm.xlu0 %193, %v187
    %v195 = vpop.permute.xlu0 %194
    %198 = vset.pattern.permute.xlu0 0
    %199 = vperm.xlu0 %198, %v188
    %v200 = vpop.permute.xlu0 %199
    %203 = vset.pattern.permute.xlu0 0
    %204 = vperm.xlu0 %203, %v189
    %v205 = vpop.permute.xlu0 %204
    %208 = vset.pattern.permute.xlu0 0
    %209 = vperm.xlu0 %208, %v190
    %v210 = vpop.permute.xlu0 %209
    %213 = vset.pattern.permute.xlu0 0
    %214 = vperm.xlu0 %213, %v191
    %v215 = vpop.permute.xlu0 %214
    %v217 = vmul.f32 %v151, %v195
    %v218 = vmul.f32 %v174, %v195
    %v219 = vmul.f32 %v153, %v200
    %v220 = vmul.f32 %v176, %v200
    %v221 = vmul.f32 %v156, %v205
    %v222 = vmul.f32 %v179, %v205
    %v223 = vmul.f32 %v158, %v210
    %v224 = vmul.f32 %v181, %v210
    %v225 = vmul.f32 %v161, %v215
    %v226 = vmul.f32 %v184, %v215
    %227 = vst [vmem:[#allocation2] sm:$0xff] %v217
    %228 = vst [vmem:[#allocation2 + $0x8] sm:$0xff] %v218
    %229 = vst [vmem:[#allocation2 + $0x10] sm:$0xff] %v219
    %230 = vst [vmem:[#allocation2 + $0x18] sm:$0xff] %v220
    %231 = vst [vmem:[#allocation2 + $0x20] sm:$0xff] %v221
    %232 = vst [vmem:[#allocation2 + $0x28] sm:$0xff] %v222
    %233 = vst [vmem:[#allocation2 + $0x30] sm:$0xff] %v223
    %234 = vst [vmem:[#allocation2 + $0x38] sm:$0xff] %v224
    %235 = vst [vmem:[#allocation2 + $0x40] sm:$0xff] %v225
    %236 = vst [vmem:[#allocation2 + $0x48] sm:$0xff] %v226
    // Predicated region
    $region18: #{_decoder_forward_impl.5} parent=1 // pred_check
      _
    $region19: #{_decoder_forward_impl.5} parent=1 // pred_check_branch
      %238 = sbr.rel (0) target = $region21
    $region20: #{_decoder_forward_impl.5} parent=1 // pred_region
      %240 = vsyncadd [#allocation3], 0
      %s241 = sshll.u32 [#allocation2], 4
      %s242 = int_to_ptr.vmem [resolvable:$true] %s241
      %s243 = sshll.u32 %s4, 4
      %s244 = int_to_ptr.hbm [resolvable:$true] %s243
      %249 = dma.vmem_to_hbm [thread:$0]  %s242, 1280, %s244, [#allocation3], 256, 256, 16
    $region21: #{_decoder_forward_impl.5} parent=1 // pred_fallthru
      _
    // Predicated region
    $region22: #{_decoder_forward_impl.5} parent=1 // pred_check
      _
    $region23: #{_decoder_forward_impl.5} parent=1 // pred_check_branch
      %251 = sbr.rel (0) target = $region25
    $region24: #{_decoder_forward_impl.5} parent=1 // pred_region
      %253 = dma.done [#allocation3], 1280
    $region25: #{_decoder_forward_impl.5} parent=1 // pred_fallthru
      _
    %254 = vsyncpa [#allocation3], 1

// kernel: _decoder_forward_impl.4
$region0: #{_decoder_forward_impl.4}
  #allocation0 [shape = 'u32[]', space=smem, size = 0x4, offset = 0x4, fixed_abs, tag = 'smem constant byte address 0x4 - core index']
  #allocation1 [shape = 'u32[72,128]{1,0:T(1,128)}', space=vmem, size = 0x9000, scoped, tag = 'internal scratch']
  #allocation2 [shape = 'f32[2,8,512]{2,1,0:T(8,128)}', space=vmem, size = 0x8000, scoped, tag = 'scratch operand']
  #allocation3 [shape = 'bf16[2,8,128]{2,1,0:T(8,128)(2,1)}', space=vmem, size = 0x1000, scoped, tag = 'scratch operand']
  #allocation4 [shape = 'bf16[8,256]{1,0:T(8,128)(2,1)}', space=vmem, size = 0x1000, scoped, tag = 'scratch operand']
  #allocation5 [shape = 's32[2]{0}', space=sflag, size = 0x8, scoped, tag = 'scratch operand']
  #allocation6 [shape = 's32[2]{0}', space=sflag, size = 0x8, scoped, tag = 'scratch operand']
  #allocation7 [shape = 's32[]', space=sflag, size = 0x4, offset = 0, fixed_abs, tag = 'sflag constant byte address 0x0 - dummy sync flag']
  #allocation8 [shape = 's32[]', space=sflag, size = 0x4, offset = 0, fixed_abs, tag = 'sflag constant byte address 0x0 - dummy sync flag']
  #allocation9 [shape = 's32[]', space=sflag, size = 0x4, offset = 0, fixed_abs, tag = 'sflag constant byte address 0x0 - dummy sync flag']
  %s0 = inlined_call_operand.vmem [shape: bf16[8,128], index: 0, kind: input, shape index: {}]
  %s1 = inlined_call_operand.vmem [shape: bf16[128,128], index: 1, kind: input, shape index: {}]
  %s2 = inlined_call_operand.vmem [shape: f32[1,128], index: 2, kind: input, shape index: {}]
  %s3 = inlined_call_operand.vmem [shape: bf16[128,128], index: 3, kind: input, shape index: {}]
  %s4 = inlined_call_operand.vmem [shape: f32[1,128], index: 4, kind: input, shape index: {}]
  %s5 = inlined_call_operand.vmem [shape: bf16[128,128], index: 5, kind: input, shape index: {}]
  %s6 = inlined_call_operand.vmem [shape: f32[1,128], index: 6, kind: input, shape index: {}]
  %s7 = inlined_call_operand.vmem [shape: bf16[256,512], index: 7, kind: input, shape index: {}]
  %s8 = inlined_call_operand.vmem [shape: f32[5,8,512], index: 8, kind: input, shape index: {}]
  %s9 = inlined_call_operand.vmem [shape: bf16[5,8,128], index: 9, kind: output, shape index: {}]
  %s10 = sld [smem:[#allocation0]]
  $region117: #{_decoder_forward_impl.4} parent=0
    _
  %s12 = ssub.s32 1, %s10
  %s13 = scalar_select 0, %s12, %s10
  // Predicated region
  $region2: #{_decoder_forward_impl.4} parent=0 // pred_check
    _
  $region3: #{_decoder_forward_impl.4} parent=0 // pred_check_branch
    %15 = sbr.rel (0) target = $region5
  $region4: #{_decoder_forward_impl.4} parent=0 // pred_region
    _
  $region5: #{_decoder_forward_impl.4} parent=0 // pred_fallthru
    _
  // Predicated region
  $region6: #{_decoder_forward_impl.4} parent=0 // pred_check
    _
  $region7: #{_decoder_forward_impl.4} parent=0 // pred_check_branch
    %17 = sbr.rel (0) target = $region9
  $region8: #{_decoder_forward_impl.4} parent=0 // pred_region
    _
  $region9: #{_decoder_forward_impl.4} parent=0 // pred_fallthru
    _
  // Predicated region
  $region10: #{_decoder_forward_impl.4} parent=0 // pred_check
    _
  $region11: #{_decoder_forward_impl.4} parent=0 // pred_check_branch
    %19 = sbr.rel (0) target = $region13
  $region12: #{_decoder_forward_impl.4} parent=0 // pred_region
    _
  $region13: #{_decoder_forward_impl.4} parent=0 // pred_fallthru
    _
  // Predicated region
  $region14: #{_decoder_forward_impl.4} parent=0 // pred_check
    _
  $region15: #{_decoder_forward_impl.4} parent=0 // pred_check_branch
    %21 = sbr.rel (0) target = $region17
  $region16: #{_decoder_forward_impl.4} parent=0 // pred_region
    _
  $region17: #{_decoder_forward_impl.4} parent=0 // pred_fallthru
    _
  // Predicated region
  $region18: #{_decoder_forward_impl.4} parent=0 // pred_check
    _
  $region19: #{_decoder_forward_impl.4} parent=0 // pred_check_branch
    %23 = sbr.rel (0) target = $region21
  $region20: #{_decoder_forward_impl.4} parent=0 // pred_region
    _
  $region21: #{_decoder_forward_impl.4} parent=0 // pred_fallthru
    _
  // Predicated region
  $region22: #{_decoder_forward_impl.4} parent=0 // pred_check
    _
  $region23: #{_decoder_forward_impl.4} parent=0 // pred_check_branch
    %25 = sbr.rel (0) target = $region25
  $region24: #{_decoder_forward_impl.4} parent=0 // pred_region
    _
  $region25: #{_decoder_forward_impl.4} parent=0 // pred_fallthru
    _
  // Predicated region
  $region26: #{_decoder_forward_impl.4} parent=0 // pred_check
    _
  $region27: #{_decoder_forward_impl.4} parent=0 // pred_check_branch
    %27 = sbr.rel (0) target = $region29
  $region28: #{_decoder_forward_impl.4} parent=0 // pred_region
    _
  $region29: #{_decoder_forward_impl.4} parent=0 // pred_fallthru
    _
  // Predicated region
  $region30: #{_decoder_forward_impl.4} parent=0 // pred_check
    _
  $region31: #{_decoder_forward_impl.4} parent=0 // pred_check_branch
    %29 = sbr.rel (0) target = $region33
  $region32: #{_decoder_forward_impl.4} parent=0 // pred_region
    _
  $region33: #{_decoder_forward_impl.4} parent=0 // pred_fallthru
    _
  // Predicated region
  $region34: #{_decoder_forward_impl.4} parent=0 // pred_check
    _
  $region35: #{_decoder_forward_impl.4} parent=0 // pred_check_branch
    %31 = sbr.rel (0) target = $region37
  $region36: #{_decoder_forward_impl.4} parent=0 // pred_region
    loop: start=0, step=1, limit=1
    $region38: #{_decoder_forward_impl.4} parent=36 // loop_pre_header
      _
    $region39: #{_decoder_forward_impl.4} parent=36 // loop_header
      %s33 = sphi 0, %s37
      %p34 = scmp.ge.s32.totalorder %s33, 1
      %s38 = sphi %s8, %s8
      %s39 = sphi [#allocation2], [#allocation2]
    $region40: #{_decoder_forward_impl.4} parent=36 // loop_header_branch
      %36 = sbr.rel (%p34) target = $region44
    $region41: #{_decoder_forward_impl.4} parent=36 // loop_body
      %v40 = vld [vmem:[%s38] sm:$0xff]
      %41 = vst [vmem:[%s39] sm:$0xff] %v40
      %v42 = vld [vmem:[%s38 + $0x8] sm:$0xff]
      %43 = vst [vmem:[%s39 + $0x8] sm:$0xff] %v42
      %v44 = vld [vmem:[%s38 + $0x10] sm:$0xff]
      %45 = vst [vmem:[%s39 + $0x10] sm:$0xff] %v44
      %v46 = vld [vmem:[%s38 + $0x18] sm:$0xff]
      %47 = vst [vmem:[%s39 + $0x18] sm:$0xff] %v46
    $region42: #{_decoder_forward_impl.4} parent=36 // loop_footer
      %s37 = sadd.s32 1, %s33
    $region43: #{_decoder_forward_impl.4} parent=36 // loop_footer_branch
      %32 = sbr.rel target = $region39
    $region44: #{_decoder_forward_impl.4} parent=36 // loop_exit
      _
  $region37: #{_decoder_forward_impl.4} parent=0 // pred_fallthru
    _
  // Predicated region
  $region45: #{_decoder_forward_impl.4} parent=0 // pred_check
    _
  $region46: #{_decoder_forward_impl.4} parent=0 // pred_check_branch
    %49 = sbr.rel target = $region48
  $region47: #{_decoder_forward_impl.4} parent=0 // pred_region
    _
  $region48: #{_decoder_forward_impl.4} parent=0 // pred_fallthru
    _
  // Predicated region
  $region49: #{_decoder_forward_impl.4} parent=0 // pred_check
    _
  $region50: #{_decoder_forward_impl.4} parent=0 // pred_check_branch
    %52 = sbr.rel (0) target = $region52
  $region51: #{_decoder_forward_impl.4} parent=0 // pred_region
    %53 = vsyncadd [#allocation5], 512
  $region52: #{_decoder_forward_impl.4} parent=0 // pred_fallthru
    _
  %v54 = vld [vmem:[%s0] sm:$0xf]
  %v55 = vld [vmem:[%s1] sm:$0xf]
  %v56 = vld [vmem:[%s1 + $0x4] sm:$0xf]
  %v57 = vld [vmem:[%s1 + $0x8] sm:$0xf]
  %v58 = vld [vmem:[%s1 + $0xc] sm:$0xf]
  %v59 = vld [vmem:[%s1 + $0x10] sm:$0xf]
  %v60 = vld [vmem:[%s1 + $0x14] sm:$0xf]
  %v61 = vld [vmem:[%s1 + $0x18] sm:$0xf]
  %v62 = vld [vmem:[%s1 + $0x1c] sm:$0xf]
  %v63 = vld [vmem:[%s1 + $0x20] sm:$0xf]
  %v64 = vld [vmem:[%s1 + $0x24] sm:$0xf]
  %v65 = vld [vmem:[%s1 + $0x28] sm:$0xf]
  %v66 = vld [vmem:[%s1 + $0x2c] sm:$0xf]
  %v67 = vld [vmem:[%s1 + $0x30] sm:$0xf]
  %v68 = vld [vmem:[%s1 + $0x34] sm:$0xf]
  %v69 = vld [vmem:[%s1 + $0x38] sm:$0xf]
  %v70 = vld [vmem:[%s1 + $0x3c] sm:$0xf]
  %v71 = vld [vmem:[%s2] sm:$0x1]
  %v73 = vperm.slane %v71, 0
  %v91 = vunpack.c.l.b16 %v55
  %v92 = vunpack.c.l.b16 %v56
  %v93 = vunpack.c.l.b16 %v57
  %v94 = vunpack.c.l.b16 %v58
  %v95 = vunpack.c.l.b16 %v59
  %v96 = vunpack.c.l.b16 %v60
  %v97 = vunpack.c.l.b16 %v61
  %v98 = vunpack.c.l.b16 %v62
  %v99 = vunpack.c.l.b16 %v63
  %v100 = vunpack.c.l.b16 %v64
  %v101 = vunpack.c.l.b16 %v65
  %v102 = vunpack.c.l.b16 %v66
  %v103 = vunpack.c.l.b16 %v67
  %v104 = vunpack.c.l.b16 %v68
  %v105 = vunpack.c.l.b16 %v69
  %v106 = vunpack.c.l.b16 %v70
  %v107 = vpack.c.b16 %v92, %v91
  %v108 = vpack.c.b16 %v94, %v93
  %v109 = vpack.c.b16 %v96, %v95
  %v110 = vpack.c.b16 %v98, %v97
  %v111 = vpack.c.b16 %v100, %v99
  %v112 = vpack.c.b16 %v102, %v101
  %v113 = vpack.c.b16 %v104, %v103
  %v114 = vpack.c.b16 %v106, %v105
  %123 = vmatpush.bf16.msra.mxu0 %v114
  %124 = vmatpush.bf16.msra.mxu0 %v113
  %125 = vmatpush.bf16.msra.mxu0 %v112
  %126 = vmatpush.bf16.msra.mxu0 %v111
  %127 = vmatpush.bf16.msra.mxu0 %v110
  %128 = vmatpush.bf16.msra.mxu0 %v109
  %129 = vmatpush.bf16.msra.mxu0 %v108
  %130 = vmatpush.bf16.msra.mxu0 %v107
  %131 = vmatmul.bf16.gmra.mxu0 %v54
  %v132 = vpop.f32.mrf.mxu0
  %v133 = vadd.f32 %v73, %v132
  %v134 = vpop.f32.mrf.mxu0
  %135 = vdwg.mxu0
  %v136 = vld [vmem:[%s3] sm:$0xf]
  %v137 = vld [vmem:[%s3 + $0x4] sm:$0xf]
  %v138 = vld [vmem:[%s3 + $0x8] sm:$0xf]
  %v139 = vld [vmem:[%s3 + $0xc] sm:$0xf]
  %v140 = vld [vmem:[%s3 + $0x10] sm:$0xf]
  %v141 = vld [vmem:[%s3 + $0x14] sm:$0xf]
  %v142 = vld [vmem:[%s3 + $0x18] sm:$0xf]
  %v143 = vld [vmem:[%s3 + $0x1c] sm:$0xf]
  %v144 = vld [vmem:[%s3 + $0x20] sm:$0xf]
  %v145 = vld [vmem:[%s3 + $0x24] sm:$0xf]
  %v146 = vld [vmem:[%s3 + $0x28] sm:$0xf]
  %v147 = vld [vmem:[%s3 + $0x2c] sm:$0xf]
  %v148 = vld [vmem:[%s3 + $0x30] sm:$0xf]
  %v149 = vld [vmem:[%s3 + $0x34] sm:$0xf]
  %v150 = vld [vmem:[%s3 + $0x38] sm:$0xf]
  %v151 = vld [vmem:[%s3 + $0x3c] sm:$0xf]
  %v152 = vld [vmem:[%s4] sm:$0x1]
  %v154 = vperm.slane %v152, 0
  %v172 = vunpack.c.l.b16 %v136
  %v173 = vunpack.c.l.b16 %v137
  %v174 = vunpack.c.l.b16 %v138
  %v175 = vunpack.c.l.b16 %v139
  %v176 = vunpack.c.l.b16 %v140
  %v177 = vunpack.c.l.b16 %v141
  %v178 = vunpack.c.l.b16 %v142
  %v179 = vunpack.c.l.b16 %v143
  %v180 = vunpack.c.l.b16 %v144
  %v181 = vunpack.c.l.b16 %v145
  %v182 = vunpack.c.l.b16 %v146
  %v183 = vunpack.c.l.b16 %v147
  %v184 = vunpack.c.l.b16 %v148
  %v185 = vunpack.c.l.b16 %v149
  %v186 = vunpack.c.l.b16 %v150
  %v187 = vunpack.c.l.b16 %v151
  %v188 = vpack.c.b16 %v173, %v172
  %v189 = vpack.c.b16 %v175, %v174
  %v190 = vpack.c.b16 %v177, %v176
  %v191 = vpack.c.b16 %v179, %v178
  %v192 = vpack.c.b16 %v181, %v180
  %v193 = vpack.c.b16 %v183, %v182
  %v194 = vpack.c.b16 %v185, %v184
  %v195 = vpack.c.b16 %v187, %v186
  %204 = vmatpush.bf16.msra.mxu0 %v195
  %205 = vmatpush.bf16.msra.mxu0 %v194
  %206 = vmatpush.bf16.msra.mxu0 %v193
  %207 = vmatpush.bf16.msra.mxu0 %v192
  %208 = vmatpush.bf16.msra.mxu0 %v191
  %209 = vmatpush.bf16.msra.mxu0 %v190
  %210 = vmatpush.bf16.msra.mxu0 %v189
  %211 = vmatpush.bf16.msra.mxu0 %v188
  %212 = vmatmul.bf16.gmra.mxu0 %v54
  %v213 = vpop.f32.mrf.mxu0
  %v214 = vadd.f32 %v154, %v213
  %v215 = vpop.f32.mrf.mxu0
  %216 = vdwg.mxu0
  %v217 = vld [vmem:[%s5] sm:$0xf]
  %v218 = vld [vmem:[%s5 + $0x4] sm:$0xf]
  %v219 = vld [vmem:[%s5 + $0x8] sm:$0xf]
  %v220 = vld [vmem:[%s5 + $0xc] sm:$0xf]
  %v221 = vld [vmem:[%s5 + $0x10] sm:$0xf]
  %v222 = vld [vmem:[%s5 + $0x14] sm:$0xf]
  %v223 = vld [vmem:[%s5 + $0x18] sm:$0xf]
  %v224 = vld [vmem:[%s5 + $0x1c] sm:$0xf]
  %v225 = vld [vmem:[%s5 + $0x20] sm:$0xf]
  %v226 = vld [vmem:[%s5 + $0x24] sm:$0xf]
  %v227 = vld [vmem:[%s5 + $0x28] sm:$0xf]
  %v228 = vld [vmem:[%s5 + $0x2c] sm:$0xf]
  %v229 = vld [vmem:[%s5 + $0x30] sm:$0xf]
  %v230 = vld [vmem:[%s5 + $0x34] sm:$0xf]
  %v231 = vld [vmem:[%s5 + $0x38] sm:$0xf]
  %v232 = vld [vmem:[%s5 + $0x3c] sm:$0xf]
  %v233 = vld [vmem:[%s7] sm:$0xff]
  %v234 = vld [vmem:[%s7 + $0x8] sm:$0xff]
  %v235 = vld [vmem:[%s7 + $0x10] sm:$0xff]
  %v236 = vld [vmem:[%s7 + $0x18] sm:$0xff]
  %v237 = vld [vmem:[%s7 + $0x20] sm:$0xff]
  %v238 = vld [vmem:[%s7 + $0x28] sm:$0xff]
  %v239 = vld [vmem:[%s7 + $0x30] sm:$0xff]
  %v240 = vld [vmem:[%s7 + $0x38] sm:$0xff]
  %v241 = vld [vmem:[%s7 + $0x40] sm:$0xff]
  %v242 = vld [vmem:[%s7 + $0x48] sm:$0xff]
  %v243 = vld [vmem:[%s7 + $0x50] sm:$0xff]
  %v244 = vld [vmem:[%s7 + $0x58] sm:$0xff]
  %v245 = vld [vmem:[%s7 + $0x60] sm:$0xff]
  %v246 = vld [vmem:[%s7 + $0x68] sm:$0xff]
  %v247 = vld [vmem:[%s7 + $0x70] sm:$0xff]
  %v248 = vld [vmem:[%s7 + $0x78] sm:$0xff]
  %v249 = vld [vmem:[%s7 + $0x80] sm:$0xff]
  %v250 = vld [vmem:[%s7 + $0x88] sm:$0xff]
  %v251 = vld [vmem:[%s7 + $0x90] sm:$0xff]
  %v252 = vld [vmem:[%s7 + $0x98] sm:$0xff]
  %v253 = vld [vmem:[%s7 + $0xa0] sm:$0xff]
  %v254 = vld [vmem:[%s7 + $0xa8] sm:$0xff]
  %v255 = vld [vmem:[%s7 + $0xb0] sm:$0xff]
  %v256 = vld [vmem:[%s7 + $0xb8] sm:$0xff]
  %v257 = vld [vmem:[%s7 + $0xc0] sm:$0xff]
  %v258 = vld [vmem:[%s7 + $0xc8] sm:$0xff]
  %v259 = vld [vmem:[%s7 + $0xd0] sm:$0xff]
  %v260 = vld [vmem:[%s7 + $0xd8] sm:$0xff]
  %v261 = vld [vmem:[%s7 + $0xe0] sm:$0xff]
  %v262 = vld [vmem:[%s7 + $0xe8] sm:$0xff]
  %v263 = vld [vmem:[%s7 + $0xf0] sm:$0xff]
  %v264 = vld [vmem:[%s7 + $0xf8] sm:$0xff]
  %v265 = vld [vmem:[%s7 + $0x100] sm:$0xff]
  %v266 = vld [vmem:[%s7 + $0x108] sm:$0xff]
  %v267 = vld [vmem:[%s7 + $0x110] sm:$0xff]
  %v268 = vld [vmem:[%s7 + $0x118] sm:$0xff]
  %v269 = vld [vmem:[%s7 + $0x120] sm:$0xff]
  %v270 = vld [vmem:[%s7 + $0x128] sm:$0xff]
  %v271 = vld [vmem:[%s7 + $0x130] sm:$0xff]
  %v272 = vld [vmem:[%s7 + $0x138] sm:$0xff]
  %v273 = vld [vmem:[%s7 + $0x140] sm:$0xff]
  %v274 = vld [vmem:[%s7 + $0x148] sm:$0xff]
  %v275 = vld [vmem:[%s7 + $0x150] sm:$0xff]
  %v276 = vld [vmem:[%s7 + $0x158] sm:$0xff]
  %v277 = vld [vmem:[%s7 + $0x160] sm:$0xff]
  %v278 = vld [vmem:[%s7 + $0x168] sm:$0xff]
  %v279 = vld [vmem:[%s7 + $0x170] sm:$0xff]
  %v280 = vld [vmem:[%s7 + $0x178] sm:$0xff]
  %v281 = vld [vmem:[%s7 + $0x180] sm:$0xff]
  %v282 = vld [vmem:[%s7 + $0x188] sm:$0xff]
  %v283 = vld [vmem:[%s7 + $0x190] sm:$0xff]
  %v284 = vld [vmem:[%s7 + $0x198] sm:$0xff]
  %v285 = vld [vmem:[%s7 + $0x1a0] sm:$0xff]
  %v286 = vld [vmem:[%s7 + $0x1a8] sm:$0xff]
  %v287 = vld [vmem:[%s7 + $0x1b0] sm:$0xff]
  %v288 = vld [vmem:[%s7 + $0x1b8] sm:$0xff]
  %v289 = vld [vmem:[%s7 + $0x1c0] sm:$0xff]
  %v290 = vld [vmem:[%s7 + $0x1c8] sm:$0xff]
  %v291 = vld [vmem:[%s7 + $0x1d0] sm:$0xff]
  %v292 = vld [vmem:[%s7 + $0x1d8] sm:$0xff]
  %v293 = vld [vmem:[%s7 + $0x1e0] sm:$0xff]
  %v294 = vld [vmem:[%s7 + $0x1e8] sm:$0xff]
  %v295 = vld [vmem:[%s7 + $0x1f0] sm:$0xff]
  %v296 = vld [vmem:[%s7 + $0x1f8] sm:$0xff]
  %v297 = vld [vmem:[%s6] sm:$0x1]
  %v299 = vperm.slane %v297, 0
  loop: start=0, step=1, limit=5
  $region53: #{_decoder_forward_impl.4} parent=0 // loop_pre_header
    _
  $region54: #{_decoder_forward_impl.4} parent=0 // loop_header
    %s302 = sphi 0, %s306
    %p303 = scmp.ge.s32.totalorder %s302, 5
    %v307 = vphi %v133, %v952
    %v308 = vphi %v214, %v950
  $region55: #{_decoder_forward_impl.4} parent=0 // loop_header_branch
    %305 = sbr.rel (%p303) target = $region59
  $region56: #{_decoder_forward_impl.4} parent=0 // loop_body
    %p309 = scmp.lt.s32.totalorder %s302, 0
    %s310 = ssub.s32 0, %s302
    %s311 = scalar_select %p309, %s310, %s302
    %s312 = sand.u32 %s311, 1
    %s313 = ssub.s32 0, %s312
    %s314 = scalar_select %p309, %s313, %s312
    %p315 = scmp.ne.s32.totalorder %s314, 0
    %p316 = scmp.lt.s32.totalorder %s314, 0
    %p317 = pnand %p316, %p315
    %p318 = pneg %p317
    %s319 = sadd.s32 %s314, 2
    %s320 = scalar_select %p318, %s319, %s314
    %s321 = sadd.s32 %s302, 1
    %p322 = scmp.lt.s32.totalorder %s321, 5
    // Predicated region
    $region60: #{_decoder_forward_impl.4} parent=56 // pred_check
      %p323 = pneg %p322
    $region61: #{_decoder_forward_impl.4} parent=56 // pred_check_branch
      %325 = sbr.rel (%p323) target = $region63
    $region62: #{_decoder_forward_impl.4} parent=56 // pred_region
      %s326 = ssub.s32 1, %s320
      %s327 = smul.u32 %s321, 4
      %s328 = smul.addr %s327, 8
      %s329 = scalar_lea.vmem %s8, %s328
      %s330 = smul.u32 %s326, 4
      %s331 = smul.addr %s330, 8
      %s332 = scalar_lea.vmem [#allocation2], %s331
      %s333 = scalar_lea.sflag [#allocation5], %s326
      // Predicated region
      $region64: #{_decoder_forward_impl.4} parent=62 // pred_check
        _
      $region65: #{_decoder_forward_impl.4} parent=62 // pred_check_branch
        %335 = sbr.rel (0) target = $region67
      $region66: #{_decoder_forward_impl.4} parent=62 // pred_region
        loop: start=0, step=1, limit=1
        $region68: #{_decoder_forward_impl.4} parent=66 // loop_pre_header
          _
        $region69: #{_decoder_forward_impl.4} parent=66 // loop_header
          %s337 = sphi 0, %s341
          %p338 = scmp.ge.s32.totalorder %s337, 1
          %s342 = sphi %s329, %s329
          %s343 = sphi %s332, %s332
        $region70: #{_decoder_forward_impl.4} parent=66 // loop_header_branch
          %340 = sbr.rel (%p338) target = $region74
        $region71: #{_decoder_forward_impl.4} parent=66 // loop_body
          %v344 = vld [vmem:[%s342] sm:$0xff]
          %345 = vst [vmem:[%s343] sm:$0xff] %v344
          %v346 = vld [vmem:[%s342 + $0x8] sm:$0xff]
          %347 = vst [vmem:[%s343 + $0x8] sm:$0xff] %v346
          %v348 = vld [vmem:[%s342 + $0x10] sm:$0xff]
          %349 = vst [vmem:[%s343 + $0x10] sm:$0xff] %v348
          %v350 = vld [vmem:[%s342 + $0x18] sm:$0xff]
          %351 = vst [vmem:[%s343 + $0x18] sm:$0xff] %v350
        $region72: #{_decoder_forward_impl.4} parent=66 // loop_footer
          %s341 = sadd.s32 1, %s337
        $region73: #{_decoder_forward_impl.4} parent=66 // loop_footer_branch
          %336 = sbr.rel target = $region69
        $region74: #{_decoder_forward_impl.4} parent=66 // loop_exit
          _
      $region67: #{_decoder_forward_impl.4} parent=62 // pred_fallthru
        _
      // Predicated region
      $region75: #{_decoder_forward_impl.4} parent=62 // pred_check
        _
      $region76: #{_decoder_forward_impl.4} parent=62 // pred_check_branch
        %353 = sbr.rel target = $region78
      $region77: #{_decoder_forward_impl.4} parent=62 // pred_region
        _
      $region78: #{_decoder_forward_impl.4} parent=62 // pred_fallthru
        _
      // Predicated region
      $region79: #{_decoder_forward_impl.4} parent=62 // pred_check
        _
      $region80: #{_decoder_forward_impl.4} parent=62 // pred_check_branch
        %356 = sbr.rel (0) target = $region82
      $region81: #{_decoder_forward_impl.4} parent=62 // pred_region
        %357 = vsyncadd %s333, 512
      $region82: #{_decoder_forward_impl.4} parent=62 // pred_fallthru
        _
    $region63: #{_decoder_forward_impl.4} parent=56 // pred_fallthru
      _
    %v358 = vpack.c.bf16 %v307, %v307
    %v375 = vunpack.c.l.b16 %v217
    %v376 = vunpack.c.l.b16 %v218
    %v377 = vunpack.c.l.b16 %v219
    %v378 = vunpack.c.l.b16 %v220
    %v379 = vunpack.c.l.b16 %v221
    %v380 = vunpack.c.l.b16 %v222
    %v381 = vunpack.c.l.b16 %v223
    %v382 = vunpack.c.l.b16 %v224
    %v383 = vunpack.c.l.b16 %v225
    %v384 = vunpack.c.l.b16 %v226
    %v385 = vunpack.c.l.b16 %v227
    %v386 = vunpack.c.l.b16 %v228
    %v387 = vunpack.c.l.b16 %v229
    %v388 = vunpack.c.l.b16 %v230
    %v389 = vunpack.c.l.b16 %v231
    %v390 = vunpack.c.l.b16 %v232
    %v391 = vpack.c.b16 %v376, %v375
    %v392 = vpack.c.b16 %v378, %v377
    %v393 = vpack.c.b16 %v380, %v379
    %v394 = vpack.c.b16 %v382, %v381
    %v395 = vpack.c.b16 %v384, %v383
    %v396 = vpack.c.b16 %v386, %v385
    %v397 = vpack.c.b16 %v388, %v387
    %v398 = vpack.c.b16 %v390, %v389
    %407 = vmatpush.bf16.msra.mxu0 %v398
    %408 = vmatpush.bf16.msra.mxu0 %v397
    %409 = vmatpush.bf16.msra.mxu0 %v396
    %410 = vmatpush.bf16.msra.mxu0 %v395
    %411 = vmatpush.bf16.msra.mxu0 %v394
    %412 = vmatpush.bf16.msra.mxu0 %v393
    %413 = vmatpush.bf16.msra.mxu0 %v392
    %414 = vmatpush.bf16.msra.mxu0 %v391
    %415 = vmatmul.bf16.gmra.mxu0 %v358
    %v416 = vpop.f32.mrf.mxu0
    %v417 = vadd.f32 %v299, %v416
    %v418 = vpop.f32.mrf.mxu0
    %419 = vdwg.mxu0
    %v420 = vxor.u32 %v417, 2147483648
    %v421 = vmul.f32 %v420, 1.442695
    %v422 = vpow.pop %v421
    %v423 = vadd.f32 %v422, 1.0
    %v424 = vrcp.pop %v423
    %v425 = vmul.f32 %v423, %v424
    %v426 = vsub.f32 1.0, %v425
    %v427 = vmul.f32 %v424, %v426
    %v428 = vadd.f32 %v424, %v427
    %vm429 = vweird.f32 %v423
    %vm430 = vweird.f32 %v424
    %vm431 = vmor %vm429, %vm430
    %v432 = vsel %vm431, %v424, %v428
    %v433 = vand.u32 2147483647, %v423
    %vm434 = vcmp.eq.f32.partialorder %v433, 8.507059e+37
    %v435 = vand.u32 %v423, 2147483648
    %v436 = vor.u32 1.1754944e-38, %v435
    %v437 = vsel %vm434, %v436, %v432
    %v438 = vmul.f32 1.0, %v437
    %v439 = vpack.c.bf16 %v438, %v438
    %440 = vst [vmem:[#allocation4] sm:$0xf] %v439
    %441 = vst [vmem:[#allocation4 + $0x4] sm:$0xf] %v358
    %s442 = smul.u32 %s320, 4
    %s443 = smul.addr %s442, 8
    %s444 = scalar_lea.vmem [#allocation2], %s443
    %s445 = scalar_lea.sflag [#allocation5], %s320
    %s446 = smul.u32 8, 1
    %s447 = smul.u32 %s446, 4
    %s448 = sshll.u32 %s447, 4
    %449 = dma.done %s445, %s448
    %v450 = vld [vmem:[%s444] sm:$0xff]
    %v451 = vld [vmem:[%s444 + $0x8] sm:$0xff]
    %v452 = vld [vmem:[%s444 + $0x10] sm:$0xff]
    %v453 = vld [vmem:[%s444 + $0x18] sm:$0xff]
    %v454 = vld [vmem:[#allocation4] sm:$0xff]
    %v456 = vunpack.c.l.b16 %v454
    %v457 = vunpack.c.h.b16 %v454
    %v458 = vpack.c.b16 %v456, %v456
    %v459 = vpack.c.b16 %v457, %v457
    %v526 = vunpack.c.l.b16 %v233
    %v527 = vunpack.c.h.b16 %v233
    %v528 = vunpack.c.l.b16 %v234
    %v529 = vunpack.c.h.b16 %v234
    %v530 = vunpack.c.l.b16 %v235
    %v531 = vunpack.c.h.b16 %v235
    %v532 = vunpack.c.l.b16 %v236
    %v533 = vunpack.c.h.b16 %v236
    %v534 = vunpack.c.l.b16 %v237
    %v535 = vunpack.c.h.b16 %v237
    %v536 = vunpack.c.l.b16 %v238
    %v537 = vunpack.c.h.b16 %v238
    %v538 = vunpack.c.l.b16 %v239
    %v539 = vunpack.c.h.b16 %v239
    %v540 = vunpack.c.l.b16 %v240
    %v541 = vunpack.c.h.b16 %v240
    %v542 = vunpack.c.l.b16 %v241
    %v543 = vunpack.c.h.b16 %v241
    %v544 = vunpack.c.l.b16 %v242
    %v545 = vunpack.c.h.b16 %v242
    %v546 = vunpack.c.l.b16 %v243
    %v547 = vunpack.c.h.b16 %v243
    %v548 = vunpack.c.l.b16 %v244
    %v549 = vunpack.c.h.b16 %v244
    %v550 = vunpack.c.l.b16 %v245
    %v551 = vunpack.c.h.b16 %v245
    %v552 = vunpack.c.l.b16 %v246
    %v553 = vunpack.c.h.b16 %v246
    %v554 = vunpack.c.l.b16 %v247
    %v555 = vunpack.c.h.b16 %v247
    %v556 = vunpack.c.l.b16 %v248
    %v557 = vunpack.c.h.b16 %v248
    %v558 = vunpack.c.l.b16 %v249
    %v559 = vunpack.c.h.b16 %v249
    %v560 = vunpack.c.l.b16 %v250
    %v561 = vunpack.c.h.b16 %v250
    %v562 = vunpack.c.l.b16 %v251
    %v563 = vunpack.c.h.b16 %v251
    %v564 = vunpack.c.l.b16 %v252
    %v565 = vunpack.c.h.b16 %v252
    %v566 = vunpack.c.l.b16 %v253
    %v567 = vunpack.c.h.b16 %v253
    %v568 = vunpack.c.l.b16 %v254
    %v569 = vunpack.c.h.b16 %v254
    %v570 = vunpack.c.l.b16 %v255
    %v571 = vunpack.c.h.b16 %v255
    %v572 = vunpack.c.l.b16 %v256
    %v573 = vunpack.c.h.b16 %v256
    %v574 = vunpack.c.l.b16 %v257
    %v575 = vunpack.c.h.b16 %v257
    %v576 = vunpack.c.l.b16 %v258
    %v577 = vunpack.c.h.b16 %v258
    %v578 = vunpack.c.l.b16 %v259
    %v579 = vunpack.c.h.b16 %v259
    %v580 = vunpack.c.l.b16 %v260
    %v581 = vunpack.c.h.b16 %v260
    %v582 = vunpack.c.l.b16 %v261
    %v583 = vunpack.c.h.b16 %v261
    %v584 = vunpack.c.l.b16 %v262
    %v585 = vunpack.c.h.b16 %v262
    %v586 = vunpack.c.l.b16 %v263
    %v587 = vunpack.c.h.b16 %v263
    %v588 = vunpack.c.l.b16 %v264
    %v589 = vunpack.c.h.b16 %v264
    %v590 = vunpack.c.l.b16 %v265
    %v591 = vunpack.c.h.b16 %v265
    %v592 = vunpack.c.l.b16 %v266
    %v593 = vunpack.c.h.b16 %v266
    %v594 = vunpack.c.l.b16 %v267
    %v595 = vunpack.c.h.b16 %v267
    %v596 = vunpack.c.l.b16 %v268
    %v597 = vunpack.c.h.b16 %v268
    %v598 = vunpack.c.l.b16 %v269
    %v599 = vunpack.c.h.b16 %v269
    %v600 = vunpack.c.l.b16 %v270
    %v601 = vunpack.c.h.b16 %v270
    %v602 = vunpack.c.l.b16 %v271
    %v603 = vunpack.c.h.b16 %v271
    %v604 = vunpack.c.l.b16 %v272
    %v605 = vunpack.c.h.b16 %v272
    %v606 = vunpack.c.l.b16 %v273
    %v607 = vunpack.c.h.b16 %v273
    %v608 = vunpack.c.l.b16 %v274
    %v609 = vunpack.c.h.b16 %v274
    %v610 = vunpack.c.l.b16 %v275
    %v611 = vunpack.c.h.b16 %v275
    %v612 = vunpack.c.l.b16 %v276
    %v613 = vunpack.c.h.b16 %v276
    %v614 = vunpack.c.l.b16 %v277
    %v615 = vunpack.c.h.b16 %v277
    %v616 = vunpack.c.l.b16 %v278
    %v617 = vunpack.c.h.b16 %v278
    %v618 = vunpack.c.l.b16 %v279
    %v619 = vunpack.c.h.b16 %v279
    %v620 = vunpack.c.l.b16 %v280
    %v621 = vunpack.c.h.b16 %v280
    %v622 = vunpack.c.l.b16 %v281
    %v623 = vunpack.c.h.b16 %v281
    %v624 = vunpack.c.l.b16 %v282
    %v625 = vunpack.c.h.b16 %v282
    %v626 = vunpack.c.l.b16 %v283
    %v627 = vunpack.c.h.b16 %v283
    %v628 = vunpack.c.l.b16 %v284
    %v629 = vunpack.c.h.b16 %v284
    %v630 = vunpack.c.l.b16 %v285
    %v631 = vunpack.c.h.b16 %v285
    %v632 = vunpack.c.l.b16 %v286
    %v633 = vunpack.c.h.b16 %v286
    %v634 = vunpack.c.l.b16 %v287
    %v635 = vunpack.c.h.b16 %v287
    %v636 = vunpack.c.l.b16 %v288
    %v637 = vunpack.c.h.b16 %v288
    %v638 = vunpack.c.l.b16 %v289
    %v639 = vunpack.c.h.b16 %v289
    %v640 = vunpack.c.l.b16 %v290
    %v641 = vunpack.c.h.b16 %v290
    %v642 = vunpack.c.l.b16 %v291
    %v643 = vunpack.c.h.b16 %v291
    %v644 = vunpack.c.l.b16 %v292
    %v645 = vunpack.c.h.b16 %v292
    %v646 = vunpack.c.l.b16 %v293
    %v647 = vunpack.c.h.b16 %v293
    %v648 = vunpack.c.l.b16 %v294
    %v649 = vunpack.c.h.b16 %v294
    %v650 = vunpack.c.l.b16 %v295
    %v651 = vunpack.c.h.b16 %v295
    %v652 = vunpack.c.l.b16 %v296
    %v653 = vunpack.c.h.b16 %v296
    %v654 = vpack.c.b16 %v530, %v526
    %v655 = vpack.c.b16 %v531, %v527
    %v656 = vpack.c.b16 %v532, %v528
    %v657 = vpack.c.b16 %v533, %v529
    %v658 = vpack.c.b16 %v538, %v534
    %v659 = vpack.c.b16 %v539, %v535
    %v660 = vpack.c.b16 %v540, %v536
    %v661 = vpack.c.b16 %v541, %v537
    %v662 = vpack.c.b16 %v546, %v542
    %v663 = vpack.c.b16 %v547, %v543
    %v664 = vpack.c.b16 %v548, %v544
    %v665 = vpack.c.b16 %v549, %v545
    %v666 = vpack.c.b16 %v554, %v550
    %v667 = vpack.c.b16 %v555, %v551
    %v668 = vpack.c.b16 %v556, %v552
    %v669 = vpack.c.b16 %v557, %v553
    %v670 = vpack.c.b16 %v562, %v558
    %v671 = vpack.c.b16 %v563, %v559
    %v672 = vpack.c.b16 %v564, %v560
    %v673 = vpack.c.b16 %v565, %v561
    %v674 = vpack.c.b16 %v570, %v566
    %v675 = vpack.c.b16 %v571, %v567
    %v676 = vpack.c.b16 %v572, %v568
    %v677 = vpack.c.b16 %v573, %v569
    %v678 = vpack.c.b16 %v578, %v574
    %v679 = vpack.c.b16 %v579, %v575
    %v680 = vpack.c.b16 %v580, %v576
    %v681 = vpack.c.b16 %v581, %v577
    %v682 = vpack.c.b16 %v586, %v582
    %v683 = vpack.c.b16 %v587, %v583
    %v684 = vpack.c.b16 %v588, %v584
    %v685 = vpack.c.b16 %v589, %v585
    %v686 = vpack.c.b16 %v594, %v590
    %v687 = vpack.c.b16 %v595, %v591
    %v688 = vpack.c.b16 %v596, %v592
    %v689 = vpack.c.b16 %v597, %v593
    %v690 = vpack.c.b16 %v602, %v598
    %v691 = vpack.c.b16 %v603, %v599
    %v692 = vpack.c.b16 %v604, %v600
    %v693 = vpack.c.b16 %v605, %v601
    %v694 = vpack.c.b16 %v610, %v606
    %v695 = vpack.c.b16 %v611, %v607
    %v696 = vpack.c.b16 %v612, %v608
    %v697 = vpack.c.b16 %v613, %v609
    %v698 = vpack.c.b16 %v618, %v614
    %v699 = vpack.c.b16 %v619, %v615
    %v700 = vpack.c.b16 %v620, %v616
    %v701 = vpack.c.b16 %v621, %v617
    %v702 = vpack.c.b16 %v626, %v622
    %v703 = vpack.c.b16 %v627, %v623
    %v704 = vpack.c.b16 %v628, %v624
    %v705 = vpack.c.b16 %v629, %v625
    %v706 = vpack.c.b16 %v634, %v630
    %v707 = vpack.c.b16 %v635, %v631
    %v708 = vpack.c.b16 %v636, %v632
    %v709 = vpack.c.b16 %v637, %v633
    %v710 = vpack.c.b16 %v642, %v638
    %v711 = vpack.c.b16 %v643, %v639
    %v712 = vpack.c.b16 %v644, %v640
    %v713 = vpack.c.b16 %v645, %v641
    %v714 = vpack.c.b16 %v650, %v646
    %v715 = vpack.c.b16 %v651, %v647
    %v716 = vpack.c.b16 %v652, %v648
    %v717 = vpack.c.b16 %v653, %v649
    %782 = vmatpush.bf16.msra.mxu0 %v682
    %783 = vmatpush.bf16.msra.mxu0 %v678
    %784 = vmatpush.bf16.msra.mxu0 %v674
    %785 = vmatpush.bf16.msra.mxu0 %v670
    %786 = vmatpush.bf16.msra.mxu0 %v666
    %787 = vmatpush.bf16.msra.mxu0 %v662
    %788 = vmatpush.bf16.msra.mxu0 %v658
    %789 = vmatpush.bf16.msra.mxu0 %v654
    %790 = vmatmul.bf16.gmra.mxu0 %v458
    %v791 = vpop.f32.mrf.mxu0
    %v792 = vadd.f32 0.0, %v791
    %v793 = vpop.f32.mrf.mxu0
    %794 = vdwg.mxu0
    %795 = vmatpush.bf16.msra.mxu0 %v714
    %796 = vmatpush.bf16.msra.mxu0 %v710
    %797 = vmatpush.bf16.msra.mxu0 %v706
    %798 = vmatpush.bf16.msra.mxu0 %v702
    %799 = vmatpush.bf16.msra.mxu0 %v698
    %800 = vmatpush.bf16.msra.mxu0 %v694
    %801 = vmatpush.bf16.msra.mxu0 %v690
    %802 = vmatpush.bf16.msra.mxu0 %v686
    %803 = vmatmul.bf16.gmra.mxu0 %v459
    %v804 = vpop.f32.mrf.mxu0
    %v805 = vadd.f32 %v792, %v804
    %v806 = vpop.f32.mrf.mxu0
    %807 = vdwg.mxu0
    %808 = vmatpush.bf16.msra.mxu0 %v683
    %809 = vmatpush.bf16.msra.mxu0 %v679
    %810 = vmatpush.bf16.msra.mxu0 %v675
    %811 = vmatpush.bf16.msra.mxu0 %v671
    %812 = vmatpush.bf16.msra.mxu0 %v667
    %813 = vmatpush.bf16.msra.mxu0 %v663
    %814 = vmatpush.bf16.msra.mxu0 %v659
    %815 = vmatpush.bf16.msra.mxu0 %v655
    %816 = vmatmul.bf16.gmra.mxu0 %v458
    %v817 = vpop.f32.mrf.mxu0
    %v818 = vadd.f32 0.0, %v817
    %v819 = vpop.f32.mrf.mxu0
    %820 = vdwg.mxu0
    %821 = vmatpush.bf16.msra.mxu0 %v715
    %822 = vmatpush.bf16.msra.mxu0 %v711
    %823 = vmatpush.bf16.msra.mxu0 %v707
    %824 = vmatpush.bf16.msra.mxu0 %v703
    %825 = vmatpush.bf16.msra.mxu0 %v699
    %826 = vmatpush.bf16.msra.mxu0 %v695
    %827 = vmatpush.bf16.msra.mxu0 %v691
    %828 = vmatpush.bf16.msra.mxu0 %v687
    %829 = vmatmul.bf16.gmra.mxu0 %v459
    %v830 = vpop.f32.mrf.mxu0
    %v831 = vadd.f32 %v818, %v830
    %v832 = vpop.f32.mrf.mxu0
    %833 = vdwg.mxu0
    %834 = vmatpush.bf16.msra.mxu0 %v684
    %835 = vmatpush.bf16.msra.mxu0 %v680
    %836 = vmatpush.bf16.msra.mxu0 %v676
    %837 = vmatpush.bf16.msra.mxu0 %v672
    %838 = vmatpush.bf16.msra.mxu0 %v668
    %839 = vmatpush.bf16.msra.mxu0 %v664
    %840 = vmatpush.bf16.msra.mxu0 %v660
    %841 = vmatpush.bf16.msra.mxu0 %v656
    %842 = vmatmul.bf16.gmra.mxu0 %v458
    %v843 = vpop.f32.mrf.mxu0
    %v844 = vadd.f32 0.0, %v843
    %v845 = vpop.f32.mrf.mxu0
    %846 = vdwg.mxu0
    %847 = vmatpush.bf16.msra.mxu0 %v716
    %848 = vmatpush.bf16.msra.mxu0 %v712
    %849 = vmatpush.bf16.msra.mxu0 %v708
    %850 = vmatpush.bf16.msra.mxu0 %v704
    %851 = vmatpush.bf16.msra.mxu0 %v700
    %852 = vmatpush.bf16.msra.mxu0 %v696
    %853 = vmatpush.bf16.msra.mxu0 %v692
    %854 = vmatpush.bf16.msra.mxu0 %v688
    %855 = vmatmul.bf16.gmra.mxu0 %v459
    %v856 = vpop.f32.mrf.mxu0
    %v857 = vadd.f32 %v844, %v856
    %v858 = vpop.f32.mrf.mxu0
    %859 = vdwg.mxu0
    %860 = vmatpush.bf16.msra.mxu0 %v685
    %861 = vmatpush.bf16.msra.mxu0 %v681
    %862 = vmatpush.bf16.msra.mxu0 %v677
    %863 = vmatpush.bf16.msra.mxu0 %v673
    %864 = vmatpush.bf16.msra.mxu0 %v669
    %865 = vmatpush.bf16.msra.mxu0 %v665
    %866 = vmatpush.bf16.msra.mxu0 %v661
    %867 = vmatpush.bf16.msra.mxu0 %v657
    %868 = vmatmul.bf16.gmra.mxu0 %v458
    %v869 = vpop.f32.mrf.mxu0
    %v870 = vadd.f32 0.0, %v869
    %v871 = vpop.f32.mrf.mxu0
    %872 = vdwg.mxu0
    %873 = vmatpush.bf16.msra.mxu0 %v717
    %874 = vmatpush.bf16.msra.mxu0 %v713
    %875 = vmatpush.bf16.msra.mxu0 %v709
    %876 = vmatpush.bf16.msra.mxu0 %v705
    %877 = vmatpush.bf16.msra.mxu0 %v701
    %878 = vmatpush.bf16.msra.mxu0 %v697
    %879 = vmatpush.bf16.msra.mxu0 %v693
    %880 = vmatpush.bf16.msra.mxu0 %v689
    %881 = vmatmul.bf16.gmra.mxu0 %v459
    %v882 = vpop.f32.mrf.mxu0
    %v883 = vadd.f32 %v870, %v882
    %v884 = vpop.f32.mrf.mxu0
    %885 = vdwg.mxu0
    %v886 = vadd.f32 %v450, %v805
    %v887 = vadd.f32 %v451, %v831
    %v888 = vadd.f32 %v452, %v857
    %v889 = vadd.f32 %v453, %v883
    %v890 = vxor.u32 %v886, 2147483648
    %v891 = vmul.f32 %v890, 1.442695
    %v892 = vpow.pop %v891
    %v893 = vadd.f32 %v892, 1.0
    %v894 = vrcp.pop %v893
    %v895 = vmul.f32 %v893, %v894
    %v896 = vsub.f32 1.0, %v895
    %v897 = vmul.f32 %v894, %v896
    %v898 = vadd.f32 %v894, %v897
    %vm899 = vweird.f32 %v893
    %vm900 = vweird.f32 %v894
    %vm901 = vmor %vm899, %vm900
    %v902 = vsel %vm901, %v894, %v898
    %v903 = vand.u32 2147483647, %v893
    %vm904 = vcmp.eq.f32.partialorder %v903, 8.507059e+37
    %v905 = vand.u32 %v893, 2147483648
    %v906 = vor.u32 1.1754944e-38, %v905
    %v907 = vsel %vm904, %v906, %v902
    %v908 = vmul.f32 1.0, %v907
    %v909 = vxor.u32 %v887, 2147483648
    %v910 = vmul.f32 %v909, 1.442695
    %v911 = vpow.pop %v910
    %v912 = vadd.f32 %v911, 1.0
    %v913 = vrcp.pop %v912
    %v914 = vmul.f32 %v912, %v913
    %v915 = vsub.f32 1.0, %v914
    %v916 = vmul.f32 %v913, %v915
    %v917 = vadd.f32 %v913, %v916
    %vm918 = vweird.f32 %v912
    %vm919 = vweird.f32 %v913
    %vm920 = vmor %vm918, %vm919
    %v921 = vsel %vm920, %v913, %v917
    %v922 = vand.u32 2147483647, %v912
    %vm923 = vcmp.eq.f32.partialorder %v922, 8.507059e+37
    %v924 = vand.u32 %v912, 2147483648
    %v925 = vor.u32 1.1754944e-38, %v924
    %v926 = vsel %vm923, %v925, %v921
    %v927 = vmul.f32 1.0, %v926
    %v928 = vtanh.pop %v888
    %v929 = vxor.u32 %v889, 2147483648
    %v930 = vmul.f32 %v929, 1.442695
    %v931 = vpow.pop %v930
    %v932 = vadd.f32 %v931, 1.0
    %v933 = vrcp.pop %v932
    %v934 = vmul.f32 %v932, %v933
    %v935 = vsub.f32 1.0, %v934
    %v936 = vmul.f32 %v933, %v935
    %v937 = vadd.f32 %v933, %v936
    %vm938 = vweird.f32 %v932
    %vm939 = vweird.f32 %v933
    %vm940 = vmor %vm938, %vm939
    %v941 = vsel %vm940, %v933, %v937
    %v942 = vand.u32 2147483647, %v932
    %vm943 = vcmp.eq.f32.partialorder %v942, 8.507059e+37
    %v944 = vand.u32 %v932, 2147483648
    %v945 = vor.u32 1.1754944e-38, %v944
    %v946 = vsel %vm943, %v945, %v941
    %v947 = vmul.f32 1.0, %v946
    %v948 = vmul.f32 %v927, %v308
    %v949 = vmul.f32 %v908, %v928
    %v950 = vadd.f32 %v948, %v949
    %v951 = vtanh.pop %v950
    %v952 = vmul.f32 %v947, %v951
    %p953 = scmp.ge.s32.totalorder %s302, 2
    // Predicated region
    $region83: #{_decoder_forward_impl.4} parent=56 // pred_check
      %p954 = pneg %p953
    $region84: #{_decoder_forward_impl.4} parent=56 // pred_check_branch
      %956 = sbr.rel (%p954) target = $region86
    $region85: #{_decoder_forward_impl.4} parent=56 // pred_region
      %s957 = scalar_lea.sflag [#allocation6], %s320
      %s958 = smul.u32 4, 1
      %s959 = smul.u32 %s958, 1
      %s960 = sshll.u32 %s959, 4
      %961 = dma.done %s957, %s960
    $region86: #{_decoder_forward_impl.4} parent=56 // pred_fallthru
      _
    %v962 = vpack.c.bf16 %v952, %v952
    %s963 = smul.addr %s320, 4
    %s964 = scalar_lea.vmem [#allocation3], %s963
    %965 = vst [vmem:[%s964] sm:$0xf] %v962
    %s966 = smul.addr %s302, 4
    %s967 = scalar_lea.vmem %s9, %s966
    %s968 = scalar_lea.sflag [#allocation6], %s320
    // Predicated region
    $region87: #{_decoder_forward_impl.4} parent=56 // pred_check
      _
    $region88: #{_decoder_forward_impl.4} parent=56 // pred_check_branch
      %970 = sbr.rel target = $region90
    $region89: #{_decoder_forward_impl.4} parent=56 // pred_region
      // Predicated region
      $region102: #{_decoder_forward_impl.4} parent=89 // pred_check
        _
      $region103: #{_decoder_forward_impl.4} parent=89 // pred_check_branch
        %986 = sbr.rel (0) target = $region105
      $region104: #{_decoder_forward_impl.4} parent=89 // pred_region
        %s988 = ssub.s32 16, 1
        loop: start=0, step=1, limit=1
        $region106: #{_decoder_forward_impl.4} parent=104 // loop_pre_header
          _
        $region107: #{_decoder_forward_impl.4} parent=104 // loop_header
          %s990 = sphi 0, %s994
          %p991 = scmp.ge.s32.totalorder %s990, 1
          %s995 = sphi %s964, %s964
          %s996 = sphi %s967, %s967
        $region108: #{_decoder_forward_impl.4} parent=104 // loop_header_branch
          %993 = sbr.rel (%p991) target = $region112
        $region109: #{_decoder_forward_impl.4} parent=104 // loop_body
          %v997 = vld [vmem:[%s995] sm:%s988]
          %998 = vst [vmem:[%s996] sm:%s988] %v997
        $region110: #{_decoder_forward_impl.4} parent=104 // loop_footer
          %s994 = sadd.s32 1, %s990
        $region111: #{_decoder_forward_impl.4} parent=104 // loop_footer_branch
          %989 = sbr.rel target = $region107
        $region112: #{_decoder_forward_impl.4} parent=104 // loop_exit
          _
      $region105: #{_decoder_forward_impl.4} parent=89 // pred_fallthru
        _
    $region90: #{_decoder_forward_impl.4} parent=56 // pred_fallthru
      _
    // Predicated region
    $region91: #{_decoder_forward_impl.4} parent=56 // pred_check
      _
    $region92: #{_decoder_forward_impl.4} parent=56 // pred_check_branch
      %972 = sbr.rel (0) target = $region94
    $region93: #{_decoder_forward_impl.4} parent=56 // pred_region
      %s974 = ssub.s32 16, 1
      loop: start=0, step=1, limit=1
      $region95: #{_decoder_forward_impl.4} parent=93 // loop_pre_header
        _
      $region96: #{_decoder_forward_impl.4} parent=93 // loop_header
        %s976 = sphi 0, %s980
        %p977 = scmp.ge.s32.totalorder %s976, 1
        %s981 = sphi %s964, %s964
        %s982 = sphi %s967, %s967
      $region97: #{_decoder_forward_impl.4} parent=93 // loop_header_branch
        %979 = sbr.rel (%p977) target = $region101
      $region98: #{_decoder_forward_impl.4} parent=93 // loop_body
        %v983 = vld [vmem:[%s981] sm:%s974]
        %984 = vst [vmem:[%s982] sm:%s974] %v983
      $region99: #{_decoder_forward_impl.4} parent=93 // loop_footer
        %s980 = sadd.s32 1, %s976
      $region100: #{_decoder_forward_impl.4} parent=93 // loop_footer_branch
        %975 = sbr.rel target = $region96
      $region101: #{_decoder_forward_impl.4} parent=93 // loop_exit
        _
    $region94: #{_decoder_forward_impl.4} parent=56 // pred_fallthru
      _
    // Predicated region
    $region113: #{_decoder_forward_impl.4} parent=56 // pred_check
      _
    $region114: #{_decoder_forward_impl.4} parent=56 // pred_check_branch
      %1001 = sbr.rel (0) target = $region116
    $region115: #{_decoder_forward_impl.4} parent=56 // pred_region
      %1002 = vsyncadd %s968, 64
    $region116: #{_decoder_forward_impl.4} parent=56 // pred_fallthru
      _
  $region57: #{_decoder_forward_impl.4} parent=0 // loop_footer
    %s306 = sadd.s32 1, %s302
  $region58: #{_decoder_forward_impl.4} parent=0 // loop_footer_branch
    %301 = sbr.rel target = $region54
  $region59: #{_decoder_forward_impl.4} parent=0 // loop_exit
    _
  %s1003 = scalar_lea.sflag [#allocation6], 1
  %s1004 = smul.u32 4, 1
  %s1005 = smul.u32 %s1004, 1
  %s1006 = sshll.u32 %s1005, 4
  %1007 = dma.done %s1003, %s1006
  %s1008 = sshll.u32 %s1005, 4
  %1009 = dma.done [#allocation6], %s1008
  %1010 = vsyncmov [#allocation5]
  %s1011 = vpop.sfrf %1010
  %p1012 = scmp.eq.s32.totalorder %s1011, 0
  %p1013 = pneg %p1012
  %1015 = shalt.err (%p1013)
  %s1016 = scalar_lea.sflag [#allocation5], 1
  %1017 = vsyncmov %s1016
  %s1018 = vpop.sfrf %1017
  %p1019 = scmp.eq.s32.totalorder %s1018, 0
  %p1020 = pneg %p1019
  %1022 = shalt.err (%p1020)
  %1023 = vsyncmov [#allocation6]
  %s1024 = vpop.sfrf %1023
  %p1025 = scmp.eq.s32.totalorder %s1024, 0
  %p1026 = pneg %p1025
  %1028 = shalt.err (%p1026)
  %s1029 = scalar_lea.sflag [#allocation6], 1
  %1030 = vsyncmov %s1029
  %s1031 = vpop.sfrf %1030
  %p1032 = scmp.eq.s32.totalorder %s1031, 0
  %p1033 = pneg %p1032
  %1035 = shalt.err (%p1033)

</llo_original>
